<compile_context>
chip_gen: v6e
topology: v6e:2x2x1
jax: 0.10.0
libtpu: 0.0.40
codegen_flags: <defaults>
</compile_context>

<pallas_src>
import jax
import jax.numpy as jnp
from jax.experimental import pallas as pl
from jax.experimental.pallas import tpu as pltpu


def _badhanau_kernel(x_ref, w1t_ref, bias_ref, wv_ref, ctx_ref, attn_ref):
    tb, s, c = x_ref.shape
    x = x_ref[...]                                   # (TB, S, C) bf16 or f32
    x2 = x.reshape(tb * s, c)                        # stack batch into M (cheap
                                                     # sublane collapse, C stays
                                                     # on lanes)

    # fc1(x) + [fc2(hidden) + b1 + b2]   (hidden projection hoisted to wrapper)
    h1 = jnp.dot(x2, w1t_ref[...],
                 preferred_element_type=jnp.float32) + bias_ref[...]
    a = jnp.tanh(h1).reshape(tb, s, -1)              # (TB, S, U) f32

    # V(a) without an N=1 matmul: VPU multiply + lane reduce over U -> (TB, S).
    # V's bias is omitted: it is a scalar and softmax is shift-invariant.
    score = jnp.sum(a * wv_ref[...], axis=-1)        # lane-dense on S, f32

    # softmax over S (last/lane axis); divide on the EUP via approx reciprocal.
    m = jnp.max(score, axis=-1, keepdims=True)
    e = jnp.exp(score - m)
    attn = e * pl.reciprocal(jnp.sum(e, axis=-1, keepdims=True), approx=True)

    # context = sum_S(attn * x): VPU broadcast-mul + sublane/XLU reduce instead
    # of TB tiny M=1 MXU matmuls.
    xf = x.astype(jnp.float32)
    ctx = jnp.sum(attn[:, :, None] * xf, axis=1)     # (TB, C) f32

    ctx_ref[...] = ctx
    attn_ref[...] = attn


def _tensorcores_per_chip():
    """Best-effort TensorCore count per chip (used only as a tiling heuristic)."""
    try:
        kind = jax.devices()[0].device_kind.lower()
    except Exception:
        return 1
    return 2 if any(t in kind for t in ("7", "v4", "v5p")) else 1


def _choose_batch_tile(B, S, C, itemsize, *, x_block_budget_bytes=4 << 20):
    """Largest batch tile whose x block stays within the VMEM byte budget.

    Single-TC chips: one block for the whole batch when it fits (grid = 1, no
    per-step overhead).  Multi-TC chips: split into >= 2 balanced blocks so the
    "parallel" grid axis shards across cores.
    """
    per_row = max(1, S * C * itemsize)
    tb_cap = max(8, x_block_budget_bytes // per_row)
    if B <= tb_cap:
        tb = B
        if _tensorcores_per_chip() >= 2 and B >= 16:
            tb = -(-B // 2)                 # ceil(B / 2)
            tb = ((tb + 7) // 8) * 8        # sublane-aligned blocks
            tb = min(tb, B)
    else:
        tb = (tb_cap // 8) * 8
    return int(max(1, tb))


def badhanau_attention(x, hidden, params, *, matmul_dtype=jnp.bfloat16,
                       x_block_budget_bytes=4 << 20):
    """x: (B, S, C) f32, hidden: (1, H) f32 (or (H,)).
    Returns (ctx (B, C), attn (B, S, 1))."""
    B, S, C = x.shape
    if hidden.ndim == 1:
        hidden = hidden.reshape(1, -1)
    # TODO(synk): the torch code unsqueezes hidden at dim 0, so a batched (B, H)
    # hidden only broadcasts when S == B; we support the well-defined batch-free
    # hidden case and assert it here.
    assert hidden.shape[0] == 1, "hidden must be batch-free, shape (1, H)"
    assert params["bv"].shape == (1,), (
        "V bias must be a single scalar (softmax shift-invariance is what lets "
        "the kernel drop it)")
    U = params["w1"].shape[0]
    f32 = jnp.float32

    # --- loop-invariant hoists (computed once, outside the grid) -------------
    w1t = params["w1"].T.astype(matmul_dtype)                           # (C, U)
    fused_bias = (jnp.dot(hidden.astype(f32), params["w2"].T.astype(f32))
                  + params["b2"].astype(f32)
                  + params["b1"].astype(f32)).reshape(1, U)             # (1, U)
    wv_row = params["wv"].reshape(1, U).astype(f32)                     # (1, U)

    # --- batch tiling (no full-x padding; Pallas masks the ragged tail) ------
    xk = x.astype(matmul_dtype)
    tb = _choose_batch_tile(B, S, C, jnp.dtype(matmul_dtype).itemsize,
                            x_block_budget_bytes=x_block_budget_bytes)
    nb = pl.cdiv(B, tb)

    ctx, attn = pl.pallas_call(
        _badhanau_kernel,
        out_shape=(
            jax.ShapeDtypeStruct((B, C), f32),
            jax.ShapeDtypeStruct((B, S), f32),      # lane-dense attention rows
        ),
        grid_spec=pltpu.PrefetchScalarGridSpec(
            num_scalar_prefetch=0,
            grid=(nb,),
            in_specs=[
                pl.BlockSpec((tb, S, C), lambda b: (b, 0, 0)),   # x tile
                pl.BlockSpec((C, U), lambda b: (0, 0)),          # W1^T
                pl.BlockSpec((1, U), lambda b: (0, 0)),          # fused bias
                pl.BlockSpec((1, U), lambda b: (0, 0)),          # V row
            ],
            out_specs=[
                pl.BlockSpec((tb, C), lambda b: (b, 0)),         # context
                pl.BlockSpec((tb, S), lambda b: (b, 0)),         # attention
            ],
        ),
        compiler_params=pltpu.CompilerParams(
            dimension_semantics=("parallel",)),
    )(xk, w1t, fused_bias, wv_row)

    attn = attn.reshape(B, S, 1)            # match torch output shape (B, S, 1)
    return ctx, attn


def init_params(key, in_ch, hidden_size, units):
    """Deterministic init mimicking torch.nn.Linear (uniform +/- 1/sqrt(fan_in))."""
    ks = jax.random.split(key, 6)
    def u(k, shape, fan_in):
        bound = 1.0 / (fan_in ** 0.5)
        return jax.random.uniform(k, shape, jnp.float32, -bound, bound)
    return {
        "w1": u(ks[0], (units, in_ch), in_ch),
        "b1": u(ks[1], (units,), in_ch),
        "w2": u(ks[2], (units, hidden_size), hidden_size),
        "b2": u(ks[3], (units,), hidden_size),
        "wv": u(ks[4], (1, units), units),
        "bv": u(ks[5], (1,), units),
    }


def reference_forward(x, hidden, p):
    """Pure-JAX transcription of the PyTorch forward (for validation)."""
    h = hidden
    while h.ndim < x.ndim:
        h = h[None]
    a = jnp.tanh(x @ p["w1"].T + p["b1"] + h @ p["w2"].T + p["b2"])
    score = a @ p["wv"].T + p["bv"]
    attn = jax.nn.softmax(score, axis=1)
    ctx = (x * attn).sum(axis=1)
    return ctx, attn


if __name__ == "__main__":
    # B=16: grid=1 on single-TC chips, 2 balanced parallel steps on v7x.
    B, S, in_ch, hidden_size, units = 16, 16, 8, 32, 64

    key = jax.random.PRNGKey(0)
    kx, kh, kp = jax.random.split(key, 3)
    x = jax.random.normal(kx, (B, S, in_ch), jnp.float32)
    hidden = jax.random.normal(kh, (1, hidden_size), jnp.float32)
    params = init_params(kp, in_ch, hidden_size, units)

    ctx_ref, attn_ref = reference_forward(x, hidden, params)

    # Exact (f32) matmul-input path: tight structural check.  Tolerance leaves
    # room for the EUP approx-reciprocal in the softmax divide.
    ctx32, attn32 = badhanau_attention(x, hidden, params,
                                       matmul_dtype=jnp.float32)
    jax.block_until_ready((ctx32, attn32))
    assert ctx32.shape == (B, in_ch) and attn32.shape == (B, S, 1)
    assert jnp.allclose(ctx32, ctx_ref, atol=1e-2, rtol=1e-2)
    assert jnp.allclose(attn32, attn_ref, atol=1e-2, rtol=1e-2)

    # Default (bf16 matmul-input) performance path: looser tolerance for the
    # bf16 quantization of x / W1^T (accumulation stays f32).
    ctx, attn = badhanau_attention(x, hidden, params)
    jax.block_until_ready((ctx, attn))
    assert ctx.shape == (B, in_ch) and attn.shape == (B, S, 1)
    assert jnp.allclose(ctx, ctx_ref, atol=5e-2, rtol=5e-2)
    assert jnp.allclose(attn, attn_ref, atol=5e-2, rtol=5e-2)

    print("KERNEL_OK")
</pallas_src>

<mosaic_0001>
module attributes {stable_mosaic.version = 11 : i64} {
  func.func @_badhanau_kernel(%arg0: i32, %arg1: memref<16x16x8xf32, #tpu.memory_space<vmem>>, %arg2: memref<8x64xf32, #tpu.memory_space<vmem>>, %arg3: memref<1x64xf32, #tpu.memory_space<vmem>>, %arg4: memref<1x64xf32, #tpu.memory_space<vmem>>, %arg5: memref<16x8xf32, #tpu.memory_space<vmem>>, %arg6: memref<16x16xf32, #tpu.memory_space<vmem>>) attributes {dimension_semantics = [#tpu.dimension_semantics<parallel>], iteration_bounds = array<i64: 1>, scalar_prefetch = 0 : i64, scratch_operands = 0 : i64, tpu.core_type = #tpu.core_type<tc>, window_params = [{transform_indices = @transform_0, window_bounds = array<i64: 16, 16, 8>}, {pipeline_mode = #tpu.pipeline_mode<synchronous>, transform_indices = @transform_1, window_bounds = array<i64: 8, 64>}, {pipeline_mode = #tpu.pipeline_mode<synchronous>, transform_indices = @transform_2, window_bounds = array<i64: 1, 64>}, {pipeline_mode = #tpu.pipeline_mode<synchronous>, transform_indices = @transform_3, window_bounds = array<i64: 1, 64>}, {transform_indices = @transform_4, window_bounds = array<i64: 16, 8>}, {transform_indices = @transform_5, window_bounds = array<i64: 16, 16>}]} {
    %c0 = arith.constant 0 : index
    %c0_0 = arith.constant 0 : index
    %c0_1 = arith.constant 0 : index
    %0 = vector.load %arg1[%c0, %c0_0, %c0_1] : memref<16x16x8xf32, #tpu.memory_space<vmem>>, vector<16x16x8xf32>
    %1 = vector.shape_cast %0 : vector<16x16x8xf32> to vector<256x8xf32>
    %c0_2 = arith.constant 0 : index
    %c0_3 = arith.constant 0 : index
    %2 = vector.load %arg2[%c0_2, %c0_3] : memref<8x64xf32, #tpu.memory_space<vmem>>, vector<8x64xf32>
    %cst = arith.constant dense<0.000000e+00> : vector<256x64xf32>
    %3 = tpu.matmul %1, %2, %cst {dimension_numbers = #tpu.dot_dimension_numbers<[1], [0], [0], [1], [0, 0, 1, 1], [], []>} : vector<256x8xf32>, vector<8x64xf32>, vector<256x64xf32> -> vector<256x64xf32>
    %c0_4 = arith.constant 0 : index
    %c0_5 = arith.constant 0 : index
    %4 = vector.load %arg3[%c0_4, %c0_5] : memref<1x64xf32, #tpu.memory_space<vmem>>, vector<1x64xf32>
    %5 = vector.broadcast %4 : vector<1x64xf32> to vector<256x64xf32>
    %6 = arith.addf %3, %5 : vector<256x64xf32>
    %7 = math.tanh %6 : vector<256x64xf32>
    %8 = vector.shape_cast %7 : vector<256x64xf32> to vector<16x16x64xf32>
    %c0_6 = arith.constant 0 : index
    %c0_7 = arith.constant 0 : index
    %9 = vector.load %arg4[%c0_6, %c0_7] : memref<1x64xf32, #tpu.memory_space<vmem>>, vector<1x64xf32>
    %10 = vector.shape_cast %9 : vector<1x64xf32> to vector<1x1x64xf32>
    %11 = vector.broadcast %10 : vector<1x1x64xf32> to vector<16x16x64xf32>
    %12 = arith.mulf %8, %11 : vector<16x16x64xf32>
    %cst_8 = arith.constant dense<0.000000e+00> : vector<16x16xf32>
    %13 = vector.multi_reduction <add>, %12, %cst_8 [2] : vector<16x16x64xf32> to vector<16x16xf32>
    %cst_9 = arith.constant dense<0xFF800000> : vector<16xf32>
    %14 = vector.multi_reduction <maximumf>, %13, %cst_9 [1] : vector<16x16xf32> to vector<16xf32>
    %15 = vector.shape_cast %14 : vector<16xf32> to vector<16x1xf32>
    %16 = vector.broadcast %15 : vector<16x1xf32> to vector<16x16xf32>
    %17 = arith.subf %13, %16 : vector<16x16xf32>
    %18 = math.exp %17 : vector<16x16xf32>
    %cst_10 = arith.constant dense<0.000000e+00> : vector<16xf32>
    %19 = vector.multi_reduction <add>, %18, %cst_10 [1] : vector<16x16xf32> to vector<16xf32>
    %20 = vector.shape_cast %19 : vector<16xf32> to vector<16x1xf32>
    %21 = tpu.reciprocal %20 {approx = true} : vector<16x1xf32> -> vector<16x1xf32>
    %22 = vector.broadcast %21 : vector<16x1xf32> to vector<16x16xf32>
    %23 = arith.mulf %18, %22 : vector<16x16xf32>
    %24 = vector.shape_cast %23 : vector<16x16xf32> to vector<16x16x1xf32>
    %25 = vector.broadcast %24 : vector<16x16x1xf32> to vector<16x16x8xf32>
    %26 = arith.mulf %25, %0 : vector<16x16x8xf32>
    %cst_11 = arith.constant dense<0.000000e+00> : vector<16x8xf32>
    %27 = vector.multi_reduction <add>, %26, %cst_11 [1] : vector<16x16x8xf32> to vector<16x8xf32>
    %c0_12 = arith.constant 0 : index
    %c0_13 = arith.constant 0 : index
    %28 = vector.load %arg5[%c0_12, %c0_13] : memref<16x8xf32, #tpu.memory_space<vmem>>, vector<16x8xf32>
    tpu.vector_store %arg5[%c0_12, %c0_13], %27 {strides = array<i32>} : memref<16x8xf32, #tpu.memory_space<vmem>>, vector<16x8xf32>,
    %c0_14 = arith.constant 0 : index
    %c0_15 = arith.constant 0 : index
    %29 = vector.load %arg6[%c0_14, %c0_15] : memref<16x16xf32, #tpu.memory_space<vmem>>, vector<16x16xf32>
    tpu.vector_store %arg6[%c0_14, %c0_15], %23 {strides = array<i32>} : memref<16x16xf32, #tpu.memory_space<vmem>>, vector<16x16xf32>,
    return
  }
  func.func @transform_0(%arg0: i32) -> (i32, i32, i32) {
    %c0_i32 = arith.constant 0 : i32
    %c0_i32_0 = arith.constant 0 : i32
    %c0_i32_1 = arith.constant 0 : i32
    return %arg0, %c0_i32, %c0_i32_0 : i32, i32, i32
  }
  func.func @transform_1(%arg0: i32) -> (i32, i32) {
    %c0_i32 = arith.constant 0 : i32
    %c0_i32_0 = arith.constant 0 : i32
    %c0_i32_1 = arith.constant 0 : i32
    return %c0_i32, %c0_i32_0 : i32, i32
  }
  func.func @transform_2(%arg0: i32) -> (i32, i32) {
    %c0_i32 = arith.constant 0 : i32
    %c0_i32_0 = arith.constant 0 : i32
    %c0_i32_1 = arith.constant 0 : i32
    return %c0_i32, %c0_i32_0 : i32, i32
  }
  func.func @transform_3(%arg0: i32) -> (i32, i32) {
    %c0_i32 = arith.constant 0 : i32
    %c0_i32_0 = arith.constant 0 : i32
    %c0_i32_1 = arith.constant 0 : i32
    return %c0_i32, %c0_i32_0 : i32, i32
  }
  func.func @transform_4(%arg0: i32) -> (i32, i32) {
    %c0_i32 = arith.constant 0 : i32
    %c0_i32_0 = arith.constant 0 : i32
    return %arg0, %c0_i32 : i32, i32
  }
  func.func @transform_5(%arg0: i32) -> (i32, i32) {
    %c0_i32 = arith.constant 0 : i32
    %c0_i32_0 = arith.constant 0 : i32
    return %arg0, %c0_i32 : i32, i32
  }
}

</mosaic_0001>

<llo_original>
// kernel: tpu_custom_call.1
$region0: #{tpu_custom_call.1}
  #allocation0 [shape = 'u32[]', space=smem, size = 0x4, offset = 0x4, fixed_abs, tag = 'smem constant byte address 0x4 - core index']
  #allocation1 [shape = 'u32[144,128]{1,0:T(1,128)}', space=vmem, size = 0x12000, scoped, tag = 'internal scratch']
  %s0 = inlined_call_operand.vmem [shape: f32[16,16,8], index: 0, kind: input, shape index: {}]
  %s1 = inlined_call_operand.vmem [shape: f32[8,64], index: 1, kind: input, shape index: {}]
  %s2 = inlined_call_operand.vmem [shape: f32[1,64], index: 2, kind: input, shape index: {}]
  %s3 = inlined_call_operand.vmem [shape: f32[1,64], index: 3, kind: input, shape index: {}]
  %s4 = inlined_call_operand.vmem [shape: f32[16,8], index: 4, kind: output, shape index: {0}]
  %s5 = inlined_call_operand.hbm [shape: f32[16,16], index: 5, kind: output, shape index: {1}]
  %6 = xla_tuple %s4, %s5
  %s7 = sld [smem:[#allocation0]]
  $region34: #{tpu_custom_call.1} parent=0
    _
  %s9 = ssub.s32 1, %s7
  %s10 = scalar_select 0, %s9, %s7
  $region1: #{tpu_custom_call.1} parent=0
    #allocation2 [shape = 'u8[8192]{0}', space=vmem, size = 0x2000, scoped, tag = 'output window, operand 1, single buffered']
    #allocation3 [shape = 's32[1]{0}', space=sflag, size = 0x4, scoped, tag = 'scoped memory for tpu_custom_call.1']
    %11 = vsyncpa [#allocation3], 0
    // Predicated region
    $region2: #{tpu_custom_call.1} parent=1 // pred_check
      _
    $region3: #{tpu_custom_call.1} parent=1 // pred_check_branch
      %13 = sbr.rel (0) target = $region5
    $region4: #{tpu_custom_call.1} parent=1 // pred_region
      _
    $region5: #{tpu_custom_call.1} parent=1 // pred_fallthru
      _
    // Predicated region
    $region6: #{tpu_custom_call.1} parent=1 // pred_check
      _
    $region7: #{tpu_custom_call.1} parent=1 // pred_check_branch
      %15 = sbr.rel (0) target = $region9
    $region8: #{tpu_custom_call.1} parent=1 // pred_region
      _
    $region9: #{tpu_custom_call.1} parent=1 // pred_fallthru
      _
    // Predicated region
    $region10: #{tpu_custom_call.1} parent=1 // pred_check
      _
    $region11: #{tpu_custom_call.1} parent=1 // pred_check_branch
      %17 = sbr.rel (0) target = $region13
    $region12: #{tpu_custom_call.1} parent=1 // pred_region
      _
    $region13: #{tpu_custom_call.1} parent=1 // pred_fallthru
      _
    // Predicated region
    $region14: #{tpu_custom_call.1} parent=1 // pred_check
      _
    $region15: #{tpu_custom_call.1} parent=1 // pred_check_branch
      %19 = sbr.rel (0) target = $region17
    $region16: #{tpu_custom_call.1} parent=1 // pred_region
      _
    $region17: #{tpu_custom_call.1} parent=1 // pred_fallthru
      _
    %v20 = vld [vmem:[%s0] sm:$0xff]
    %v21 = vld [vmem:[%s0 + $0x8] sm:$0xff]
    %v22 = vld [vmem:[%s0 + $0x10] sm:$0xff]
    %v23 = vld [vmem:[%s0 + $0x18] sm:$0xff]
    %v24 = vld [vmem:[%s0 + $0x20] sm:$0xff]
    %v25 = vld [vmem:[%s0 + $0x28] sm:$0xff]
    %v26 = vld [vmem:[%s0 + $0x30] sm:$0xff]
    %v27 = vld [vmem:[%s0 + $0x38] sm:$0xff]
    %v28 = vld [vmem:[%s0 + $0x40] sm:$0xff]
    %v29 = vld [vmem:[%s0 + $0x48] sm:$0xff]
    %v30 = vld [vmem:[%s0 + $0x50] sm:$0xff]
    %v31 = vld [vmem:[%s0 + $0x58] sm:$0xff]
    %v32 = vld [vmem:[%s0 + $0x60] sm:$0xff]
    %v33 = vld [vmem:[%s0 + $0x68] sm:$0xff]
    %v34 = vld [vmem:[%s0 + $0x70] sm:$0xff]
    %v35 = vld [vmem:[%s0 + $0x78] sm:$0xff]
    %v36 = vld [vmem:[%s0 + $0x80] sm:$0xff]
    %v37 = vld [vmem:[%s0 + $0x88] sm:$0xff]
    %v38 = vld [vmem:[%s0 + $0x90] sm:$0xff]
    %v39 = vld [vmem:[%s0 + $0x98] sm:$0xff]
    %v40 = vld [vmem:[%s0 + $0xa0] sm:$0xff]
    %v41 = vld [vmem:[%s0 + $0xa8] sm:$0xff]
    %v42 = vld [vmem:[%s0 + $0xb0] sm:$0xff]
    %v43 = vld [vmem:[%s0 + $0xb8] sm:$0xff]
    %v44 = vld [vmem:[%s0 + $0xc0] sm:$0xff]
    %v45 = vld [vmem:[%s0 + $0xc8] sm:$0xff]
    %v46 = vld [vmem:[%s0 + $0xd0] sm:$0xff]
    %v47 = vld [vmem:[%s0 + $0xd8] sm:$0xff]
    %v48 = vld [vmem:[%s0 + $0xe0] sm:$0xff]
    %v49 = vld [vmem:[%s0 + $0xe8] sm:$0xff]
    %v50 = vld [vmem:[%s0 + $0xf0] sm:$0xff]
    %v51 = vld [vmem:[%s0 + $0xf8] sm:$0xff]
    %v52 = vld [vmem:[%s1] sm:$0xff]
    %v53 = vld [vmem:[%s2] sm:$0x1]
    %v55 = vlaneseq
    %v56 = vshrl.u32 %v55, 7
    %v57 = vsub.s32 0, %v56
    %v58 = vrot.slane %v53, %v57
    %vm60 = vcmask 64512
    %v62 = vsel %vm60, %v20, 0
    %v65 = vsel %vm60, %v21, 0
    %v68 = vsel %vm60, %v22, 0
    %v71 = vsel %vm60, %v23, 0
    %v74 = vsel %vm60, %v24, 0
    %v77 = vsel %vm60, %v25, 0
    %v80 = vsel %vm60, %v26, 0
    %v83 = vsel %vm60, %v27, 0
    %v86 = vsel %vm60, %v28, 0
    %v89 = vsel %vm60, %v29, 0
    %v92 = vsel %vm60, %v30, 0
    %v95 = vsel %vm60, %v31, 0
    %v98 = vsel %vm60, %v32, 0
    %v101 = vsel %vm60, %v33, 0
    %v104 = vsel %vm60, %v34, 0
    %v107 = vsel %vm60, %v35, 0
    %v110 = vsel %vm60, %v36, 0
    %v113 = vsel %vm60, %v37, 0
    %v116 = vsel %vm60, %v38, 0
    %v119 = vsel %vm60, %v39, 0
    %v122 = vsel %vm60, %v40, 0
    %v125 = vsel %vm60, %v41, 0
    %v128 = vsel %vm60, %v42, 0
    %v131 = vsel %vm60, %v43, 0
    %v134 = vsel %vm60, %v44, 0
    %v137 = vsel %vm60, %v45, 0
    %v140 = vsel %vm60, %v46, 0
    %v143 = vsel %vm60, %v47, 0
    %v146 = vsel %vm60, %v48, 0
    %v149 = vsel %vm60, %v49, 0
    %v152 = vsel %vm60, %v50, 0
    %v155 = vsel %vm60, %v51, 0
    %157 = vmatprep.subr.mxu0 0.0
    %158 = vmatpush1.msra.mxu0 0.0
    %159 = vmatprep.subr.mxu0 0.0
    %160 = vmatpush1.msra.mxu0 0.0
    %161 = vmatprep.subr.mxu0 0.0
    %162 = vmatpush1.msra.mxu0 0.0
    %163 = vmatprep.subr.mxu0 0.0
    %164 = vmatpush1.msra.mxu0 0.0
    %165 = vmatprep.subr.mxu0 0.0
    %166 = vmatpush1.msra.mxu0 0.0
    %167 = vmatprep.subr.mxu0 0.0
    %168 = vmatpush1.msra.mxu0 0.0
    %169 = vmatprep.subr.mxu0 0.0
    %170 = vmatpush1.msra.mxu0 0.0
    %171 = vmatprep.subr.mxu0 0.0
    %172 = vmatpush1.msra.mxu0 0.0
    %173 = vmatprep.subr.mxu0 0.0
    %174 = vmatpush1.msra.mxu0 0.0
    %175 = vmatprep.subr.mxu0 0.0
    %176 = vmatpush1.msra.mxu0 0.0
    %177 = vmatprep.subr.mxu0 0.0
    %178 = vmatpush1.msra.mxu0 0.0
    %179 = vmatprep.subr.mxu0 0.0
    %180 = vmatpush1.msra.mxu0 0.0
    %181 = vmatprep.subr.mxu0 0.0
    %182 = vmatpush1.msra.mxu0 0.0
    %183 = vmatprep.subr.mxu0 0.0
    %184 = vmatpush1.msra.mxu0 0.0
    %185 = vmatprep.subr.mxu0 0.0
    %186 = vmatpush1.msra.mxu0 0.0
    %187 = vmatprep.subr.mxu0 0.0
    %188 = vmatpush1.msra.mxu0 %v52
    %189 = vmatprep.subr.mxu0 0.0
    %190 = vmatpush2.msra.mxu0 0.0
    %191 = vmatprep.subr.mxu0 0.0
    %192 = vmatpush2.msra.mxu0 0.0
    %193 = vmatprep.subr.mxu0 0.0
    %194 = vmatpush2.msra.mxu0 0.0
    %195 = vmatprep.subr.mxu0 0.0
    %196 = vmatpush2.msra.mxu0 0.0
    %197 = vmatprep.subr.mxu0 0.0
    %198 = vmatpush2.msra.mxu0 0.0
    %199 = vmatprep.subr.mxu0 0.0
    %200 = vmatpush2.msra.mxu0 0.0
    %201 = vmatprep.subr.mxu0 0.0
    %202 = vmatpush2.msra.mxu0 0.0
    %203 = vmatprep.subr.mxu0 0.0
    %204 = vmatpush2.msra.mxu0 0.0
    %205 = vmatprep.subr.mxu0 0.0
    %206 = vmatpush2.msra.mxu0 0.0
    %207 = vmatprep.subr.mxu0 0.0
    %208 = vmatpush2.msra.mxu0 0.0
    %209 = vmatprep.subr.mxu0 0.0
    %210 = vmatpush2.msra.mxu0 0.0
    %211 = vmatprep.subr.mxu0 0.0
    %212 = vmatpush2.msra.mxu0 0.0
    %213 = vmatprep.subr.mxu0 0.0
    %214 = vmatpush2.msra.mxu0 0.0
    %215 = vmatprep.subr.mxu0 0.0
    %216 = vmatpush2.msra.mxu0 0.0
    %217 = vmatprep.subr.mxu0 0.0
    %218 = vmatpush2.msra.mxu0 0.0
    %219 = vmatprep.subr.mxu0 0.0
    %220 = vmatpush2.msra.mxu0 0.0
    %221 = vmatprep.mubr.f32.mxu0 0.0
    %222 = vmatmul.mubr.f32.gmra.mxu0 %v62
    %v223 = vpop.f32.mrf.mxu0
    %v224 = vadd.f32 %v58, %v223
    %v225 = vpop.f32.mrf.mxu0
    %226 = vmatprep.mubr.f32.mxu0 0.0
    %227 = vmatmul.mubr.f32.gmra.mxu0 %v65
    %v228 = vpop.f32.mrf.mxu0
    %v229 = vadd.f32 %v58, %v228
    %v230 = vpop.f32.mrf.mxu0
    %231 = vmatprep.mubr.f32.mxu0 0.0
    %232 = vmatmul.mubr.f32.gmra.mxu0 %v68
    %v233 = vpop.f32.mrf.mxu0
    %v234 = vadd.f32 %v58, %v233
    %v235 = vpop.f32.mrf.mxu0
    %236 = vmatprep.mubr.f32.mxu0 0.0
    %237 = vmatmul.mubr.f32.gmra.mxu0 %v71
    %v238 = vpop.f32.mrf.mxu0
    %v239 = vadd.f32 %v58, %v238
    %v240 = vpop.f32.mrf.mxu0
    %241 = vmatprep.mubr.f32.mxu0 0.0
    %242 = vmatmul.mubr.f32.gmra.mxu0 %v74
    %v243 = vpop.f32.mrf.mxu0
    %v244 = vadd.f32 %v58, %v243
    %v245 = vpop.f32.mrf.mxu0
    %246 = vmatprep.mubr.f32.mxu0 0.0
    %247 = vmatmul.mubr.f32.gmra.mxu0 %v77
    %v248 = vpop.f32.mrf.mxu0
    %v249 = vadd.f32 %v58, %v248
    %v250 = vpop.f32.mrf.mxu0
    %251 = vmatprep.mubr.f32.mxu0 0.0
    %252 = vmatmul.mubr.f32.gmra.mxu0 %v80
    %v253 = vpop.f32.mrf.mxu0
    %v254 = vadd.f32 %v58, %v253
    %v255 = vpop.f32.mrf.mxu0
    %256 = vmatprep.mubr.f32.mxu0 0.0
    %257 = vmatmul.mubr.f32.gmra.mxu0 %v83
    %v258 = vpop.f32.mrf.mxu0
    %v259 = vadd.f32 %v58, %v258
    %v260 = vpop.f32.mrf.mxu0
    %261 = vmatprep.mubr.f32.mxu0 0.0
    %262 = vmatmul.mubr.f32.gmra.mxu0 %v86
    %v263 = vpop.f32.mrf.mxu0
    %v264 = vadd.f32 %v58, %v263
    %v265 = vpop.f32.mrf.mxu0
    %266 = vmatprep.mubr.f32.mxu0 0.0
    %267 = vmatmul.mubr.f32.gmra.mxu0 %v89
    %v268 = vpop.f32.mrf.mxu0
    %v269 = vadd.f32 %v58, %v268
    %v270 = vpop.f32.mrf.mxu0
    %271 = vmatprep.mubr.f32.mxu0 0.0
    %272 = vmatmul.mubr.f32.gmra.mxu0 %v92
    %v273 = vpop.f32.mrf.mxu0
    %v274 = vadd.f32 %v58, %v273
    %v275 = vpop.f32.mrf.mxu0
    %276 = vmatprep.mubr.f32.mxu0 0.0
    %277 = vmatmul.mubr.f32.gmra.mxu0 %v95
    %v278 = vpop.f32.mrf.mxu0
    %v279 = vadd.f32 %v58, %v278
    %v280 = vpop.f32.mrf.mxu0
    %281 = vmatprep.mubr.f32.mxu0 0.0
    %282 = vmatmul.mubr.f32.gmra.mxu0 %v98
    %v283 = vpop.f32.mrf.mxu0
    %v284 = vadd.f32 %v58, %v283
    %v285 = vpop.f32.mrf.mxu0
    %286 = vmatprep.mubr.f32.mxu0 0.0
    %287 = vmatmul.mubr.f32.gmra.mxu0 %v101
    %v288 = vpop.f32.mrf.mxu0
    %v289 = vadd.f32 %v58, %v288
    %v290 = vpop.f32.mrf.mxu0
    %291 = vmatprep.mubr.f32.mxu0 0.0
    %292 = vmatmul.mubr.f32.gmra.mxu0 %v104
    %v293 = vpop.f32.mrf.mxu0
    %v294 = vadd.f32 %v58, %v293
    %v295 = vpop.f32.mrf.mxu0
    %296 = vmatprep.mubr.f32.mxu0 0.0
    %297 = vmatmul.mubr.f32.gmra.mxu0 %v107
    %v298 = vpop.f32.mrf.mxu0
    %v299 = vadd.f32 %v58, %v298
    %v300 = vpop.f32.mrf.mxu0
    %301 = vmatprep.mubr.f32.mxu0 0.0
    %302 = vmatmul.mubr.f32.gmra.mxu0 %v110
    %v303 = vpop.f32.mrf.mxu0
    %v304 = vadd.f32 %v58, %v303
    %v305 = vpop.f32.mrf.mxu0
    %306 = vmatprep.mubr.f32.mxu0 0.0
    %307 = vmatmul.mubr.f32.gmra.mxu0 %v113
    %v308 = vpop.f32.mrf.mxu0
    %v309 = vadd.f32 %v58, %v308
    %v310 = vpop.f32.mrf.mxu0
    %311 = vmatprep.mubr.f32.mxu0 0.0
    %312 = vmatmul.mubr.f32.gmra.mxu0 %v116
    %v313 = vpop.f32.mrf.mxu0
    %v314 = vadd.f32 %v58, %v313
    %v315 = vpop.f32.mrf.mxu0
    %316 = vmatprep.mubr.f32.mxu0 0.0
    %317 = vmatmul.mubr.f32.gmra.mxu0 %v119
    %v318 = vpop.f32.mrf.mxu0
    %v319 = vadd.f32 %v58, %v318
    %v320 = vpop.f32.mrf.mxu0
    %321 = vmatprep.mubr.f32.mxu0 0.0
    %322 = vmatmul.mubr.f32.gmra.mxu0 %v122
    %v323 = vpop.f32.mrf.mxu0
    %v324 = vadd.f32 %v58, %v323
    %v325 = vpop.f32.mrf.mxu0
    %326 = vmatprep.mubr.f32.mxu0 0.0
    %327 = vmatmul.mubr.f32.gmra.mxu0 %v125
    %v328 = vpop.f32.mrf.mxu0
    %v329 = vadd.f32 %v58, %v328
    %v330 = vpop.f32.mrf.mxu0
    %331 = vmatprep.mubr.f32.mxu0 0.0
    %332 = vmatmul.mubr.f32.gmra.mxu0 %v128
    %v333 = vpop.f32.mrf.mxu0
    %v334 = vadd.f32 %v58, %v333
    %v335 = vpop.f32.mrf.mxu0
    %336 = vmatprep.mubr.f32.mxu0 0.0
    %337 = vmatmul.mubr.f32.gmra.mxu0 %v131
    %v338 = vpop.f32.mrf.mxu0
    %v339 = vadd.f32 %v58, %v338
    %v340 = vpop.f32.mrf.mxu0
    %341 = vmatprep.mubr.f32.mxu0 0.0
    %342 = vmatmul.mubr.f32.gmra.mxu0 %v134
    %v343 = vpop.f32.mrf.mxu0
    %v344 = vadd.f32 %v58, %v343
    %v345 = vpop.f32.mrf.mxu0
    %346 = vmatprep.mubr.f32.mxu0 0.0
    %347 = vmatmul.mubr.f32.gmra.mxu0 %v137
    %v348 = vpop.f32.mrf.mxu0
    %v349 = vadd.f32 %v58, %v348
    %v350 = vpop.f32.mrf.mxu0
    %351 = vmatprep.mubr.f32.mxu0 0.0
    %352 = vmatmul.mubr.f32.gmra.mxu0 %v140
    %v353 = vpop.f32.mrf.mxu0
    %v354 = vadd.f32 %v58, %v353
    %v355 = vpop.f32.mrf.mxu0
    %356 = vmatprep.mubr.f32.mxu0 0.0
    %357 = vmatmul.mubr.f32.gmra.mxu0 %v143
    %v358 = vpop.f32.mrf.mxu0
    %v359 = vadd.f32 %v58, %v358
    %v360 = vpop.f32.mrf.mxu0
    %361 = vmatprep.mubr.f32.mxu0 0.0
    %362 = vmatmul.mubr.f32.gmra.mxu0 %v146
    %v363 = vpop.f32.mrf.mxu0
    %v364 = vadd.f32 %v58, %v363
    %v365 = vpop.f32.mrf.mxu0
    %366 = vmatprep.mubr.f32.mxu0 0.0
    %367 = vmatmul.mubr.f32.gmra.mxu0 %v149
    %v368 = vpop.f32.mrf.mxu0
    %v369 = vadd.f32 %v58, %v368
    %v370 = vpop.f32.mrf.mxu0
    %371 = vmatprep.mubr.f32.mxu0 0.0
    %372 = vmatmul.mubr.f32.gmra.mxu0 %v152
    %v373 = vpop.f32.mrf.mxu0
    %v374 = vadd.f32 %v58, %v373
    %v375 = vpop.f32.mrf.mxu0
    %376 = vmatprep.mubr.f32.mxu0 0.0
    %377 = vmatmul.mubr.f32.gmra.mxu0 %v155
    %v378 = vpop.f32.mrf.mxu0
    %v379 = vadd.f32 %v58, %v378
    %v380 = vpop.f32.mrf.mxu0
    %381 = vdwg.mxu0
    %v382 = vtanh.pop %v224
    %v383 = vtanh.pop %v229
    %v384 = vtanh.pop %v234
    %v385 = vtanh.pop %v239
    %v386 = vtanh.pop %v244
    %v387 = vtanh.pop %v249
    %v388 = vtanh.pop %v254
    %v389 = vtanh.pop %v259
    %v390 = vtanh.pop %v264
    %v391 = vtanh.pop %v269
    %v392 = vtanh.pop %v274
    %v393 = vtanh.pop %v279
    %v394 = vtanh.pop %v284
    %v395 = vtanh.pop %v289
    %v396 = vtanh.pop %v294
    %v397 = vtanh.pop %v299
    %v398 = vtanh.pop %v304
    %v399 = vtanh.pop %v309
    %v400 = vtanh.pop %v314
    %v401 = vtanh.pop %v319
    %v402 = vtanh.pop %v324
    %v403 = vtanh.pop %v329
    %v404 = vtanh.pop %v334
    %v405 = vtanh.pop %v339
    %v406 = vtanh.pop %v344
    %v407 = vtanh.pop %v349
    %v408 = vtanh.pop %v354
    %v409 = vtanh.pop %v359
    %v410 = vtanh.pop %v364
    %v411 = vtanh.pop %v369
    %v412 = vtanh.pop %v374
    %v413 = vtanh.pop %v379
    %v414 = vld [vmem:[%s3] sm:$0x1]
    %v416 = vlaneseq
    %v417 = vshrl.u32 %v416, 7
    %v418 = vsub.s32 0, %v417
    %v419 = vrot.slane %v414, %v418
    %v421 = vmul.f32 %v382, %v419
    %v422 = vmul.f32 %v383, %v419
    %v423 = vmul.f32 %v384, %v419
    %v424 = vmul.f32 %v385, %v419
    %v425 = vmul.f32 %v386, %v419
    %v426 = vmul.f32 %v387, %v419
    %v427 = vmul.f32 %v388, %v419
    %v428 = vmul.f32 %v389, %v419
    %v429 = vmul.f32 %v390, %v419
    %v430 = vmul.f32 %v391, %v419
    %v431 = vmul.f32 %v392, %v419
    %v432 = vmul.f32 %v393, %v419
    %v433 = vmul.f32 %v394, %v419
    %v434 = vmul.f32 %v395, %v419
    %v435 = vmul.f32 %v396, %v419
    %v436 = vmul.f32 %v397, %v419
    %v437 = vmul.f32 %v398, %v419
    %v438 = vmul.f32 %v399, %v419
    %v439 = vmul.f32 %v400, %v419
    %v440 = vmul.f32 %v401, %v419
    %v441 = vmul.f32 %v402, %v419
    %v442 = vmul.f32 %v403, %v419
    %v443 = vmul.f32 %v404, %v419
    %v444 = vmul.f32 %v405, %v419
    %v445 = vmul.f32 %v406, %v419
    %v446 = vmul.f32 %v407, %v419
    %v447 = vmul.f32 %v408, %v419
    %v448 = vmul.f32 %v409, %v419
    %v449 = vmul.f32 %v410, %v419
    %v450 = vmul.f32 %v411, %v419
    %v451 = vmul.f32 %v412, %v419
    %v452 = vmul.f32 %v413, %v419
    %vm453 = vcmask 523264
    %v454 = vsel %vm453, %v421, 0.0
    %455 = vadd.xlane.f32.xlu0 %v454
    %v456 = vpop.xlane.xlu0 %455
    %v457 = vsel %vm453, %v422, 0.0
    %458 = vadd.xlane.f32.xlu0 %v457
    %v459 = vpop.xlane.xlu0 %458
    %v460 = vsel %vm453, %v423, 0.0
    %461 = vadd.xlane.f32.xlu0 %v460
    %v462 = vpop.xlane.xlu0 %461
    %v463 = vsel %vm453, %v424, 0.0
    %464 = vadd.xlane.f32.xlu0 %v463
    %v465 = vpop.xlane.xlu0 %464
    %v466 = vsel %vm453, %v425, 0.0
    %467 = vadd.xlane.f32.xlu0 %v466
    %v468 = vpop.xlane.xlu0 %467
    %v469 = vsel %vm453, %v426, 0.0
    %470 = vadd.xlane.f32.xlu0 %v469
    %v471 = vpop.xlane.xlu0 %470
    %v472 = vsel %vm453, %v427, 0.0
    %473 = vadd.xlane.f32.xlu0 %v472
    %v474 = vpop.xlane.xlu0 %473
    %v475 = vsel %vm453, %v428, 0.0
    %476 = vadd.xlane.f32.xlu0 %v475
    %v477 = vpop.xlane.xlu0 %476
    %v478 = vsel %vm453, %v429, 0.0
    %479 = vadd.xlane.f32.xlu0 %v478
    %v480 = vpop.xlane.xlu0 %479
    %v481 = vsel %vm453, %v430, 0.0
    %482 = vadd.xlane.f32.xlu0 %v481
    %v483 = vpop.xlane.xlu0 %482
    %v484 = vsel %vm453, %v431, 0.0
    %485 = vadd.xlane.f32.xlu0 %v484
    %v486 = vpop.xlane.xlu0 %485
    %v487 = vsel %vm453, %v432, 0.0
    %488 = vadd.xlane.f32.xlu0 %v487
    %v489 = vpop.xlane.xlu0 %488
    %v490 = vsel %vm453, %v433, 0.0
    %491 = vadd.xlane.f32.xlu0 %v490
    %v492 = vpop.xlane.xlu0 %491
    %v493 = vsel %vm453, %v434, 0.0
    %494 = vadd.xlane.f32.xlu0 %v493
    %v495 = vpop.xlane.xlu0 %494
    %v496 = vsel %vm453, %v435, 0.0
    %497 = vadd.xlane.f32.xlu0 %v496
    %v498 = vpop.xlane.xlu0 %497
    %v499 = vsel %vm453, %v436, 0.0
    %500 = vadd.xlane.f32.xlu0 %v499
    %v501 = vpop.xlane.xlu0 %500
    %v502 = vsel %vm453, %v437, 0.0
    %503 = vadd.xlane.f32.xlu0 %v502
    %v504 = vpop.xlane.xlu0 %503
    %v505 = vsel %vm453, %v438, 0.0
    %506 = vadd.xlane.f32.xlu0 %v505
    %v507 = vpop.xlane.xlu0 %506
    %v508 = vsel %vm453, %v439, 0.0
    %509 = vadd.xlane.f32.xlu0 %v508
    %v510 = vpop.xlane.xlu0 %509
    %v511 = vsel %vm453, %v440, 0.0
    %512 = vadd.xlane.f32.xlu0 %v511
    %v513 = vpop.xlane.xlu0 %512
    %v514 = vsel %vm453, %v441, 0.0
    %515 = vadd.xlane.f32.xlu0 %v514
    %v516 = vpop.xlane.xlu0 %515
    %v517 = vsel %vm453, %v442, 0.0
    %518 = vadd.xlane.f32.xlu0 %v517
    %v519 = vpop.xlane.xlu0 %518
    %v520 = vsel %vm453, %v443, 0.0
    %521 = vadd.xlane.f32.xlu0 %v520
    %v522 = vpop.xlane.xlu0 %521
    %v523 = vsel %vm453, %v444, 0.0
    %524 = vadd.xlane.f32.xlu0 %v523
    %v525 = vpop.xlane.xlu0 %524
    %v526 = vsel %vm453, %v445, 0.0
    %527 = vadd.xlane.f32.xlu0 %v526
    %v528 = vpop.xlane.xlu0 %527
    %v529 = vsel %vm453, %v446, 0.0
    %530 = vadd.xlane.f32.xlu0 %v529
    %v531 = vpop.xlane.xlu0 %530
    %v532 = vsel %vm453, %v447, 0.0
    %533 = vadd.xlane.f32.xlu0 %v532
    %v534 = vpop.xlane.xlu0 %533
    %v535 = vsel %vm453, %v448, 0.0
    %536 = vadd.xlane.f32.xlu0 %v535
    %v537 = vpop.xlane.xlu0 %536
    %v538 = vsel %vm453, %v449, 0.0
    %539 = vadd.xlane.f32.xlu0 %v538
    %v540 = vpop.xlane.xlu0 %539
    %v541 = vsel %vm453, %v450, 0.0
    %542 = vadd.xlane.f32.xlu0 %v541
    %v543 = vpop.xlane.xlu0 %542
    %v544 = vsel %vm453, %v451, 0.0
    %545 = vadd.xlane.f32.xlu0 %v544
    %v546 = vpop.xlane.xlu0 %545
    %v547 = vsel %vm453, %v452, 0.0
    %548 = vadd.xlane.f32.xlu0 %v547
    %v549 = vpop.xlane.xlu0 %548
    %v582 = vlaneseq
    %v583 = vand.u32 %v582, 127
    %v584 = vlaneseq
    %v585 = vshrl.u32 %v584, 7
    %v586 = vsub.s32 %v583, %v585
    %v587 = vrot.slane %v456, %v586
    %v588 = vadd.s32 %v583, 4294967288
    %v589 = vlaneseq
    %v590 = vshrl.u32 %v589, 7
    %v591 = vsub.s32 %v588, %v590
    %v592 = vrot.slane %v459, %v591
    %vm593 = vcmask 130112
    %v594 = vsel %vm593, %v592, %v587
    %v595 = vlaneseq
    %v596 = vshrl.u32 %v595, 7
    %v597 = vsub.s32 %v583, %v596
    %v598 = vrot.slane %v462, %v597
    %v599 = vlaneseq
    %v600 = vshrl.u32 %v599, 7
    %v601 = vsub.s32 %v588, %v600
    %v602 = vrot.slane %v465, %v601
    %v603 = vsel %vm593, %v602, %v598
    %v604 = vlaneseq
    %v605 = vshrl.u32 %v604, 7
    %v606 = vsub.s32 %v583, %v605
    %v607 = vrot.slane %v468, %v606
    %v608 = vlaneseq
    %v609 = vshrl.u32 %v608, 7
    %v610 = vsub.s32 %v588, %v609
    %v611 = vrot.slane %v471, %v610
    %v612 = vsel %vm593, %v611, %v607
    %v613 = vlaneseq
    %v614 = vshrl.u32 %v613, 7
    %v615 = vsub.s32 %v583, %v614
    %v616 = vrot.slane %v474, %v615
    %v617 = vlaneseq
    %v618 = vshrl.u32 %v617, 7
    %v619 = vsub.s32 %v588, %v618
    %v620 = vrot.slane %v477, %v619
    %v621 = vsel %vm593, %v620, %v616
    %v622 = vlaneseq
    %v623 = vshrl.u32 %v622, 7
    %v624 = vsub.s32 %v583, %v623
    %v625 = vrot.slane %v480, %v624
    %v626 = vlaneseq
    %v627 = vshrl.u32 %v626, 7
    %v628 = vsub.s32 %v588, %v627
    %v629 = vrot.slane %v483, %v628
    %v630 = vsel %vm593, %v629, %v625
    %v631 = vlaneseq
    %v632 = vshrl.u32 %v631, 7
    %v633 = vsub.s32 %v583, %v632
    %v634 = vrot.slane %v486, %v633
    %v635 = vlaneseq
    %v636 = vshrl.u32 %v635, 7
    %v637 = vsub.s32 %v588, %v636
    %v638 = vrot.slane %v489, %v637
    %v639 = vsel %vm593, %v638, %v634
    %v640 = vlaneseq
    %v641 = vshrl.u32 %v640, 7
    %v642 = vsub.s32 %v583, %v641
    %v643 = vrot.slane %v492, %v642
    %v644 = vlaneseq
    %v645 = vshrl.u32 %v644, 7
    %v646 = vsub.s32 %v588, %v645
    %v647 = vrot.slane %v495, %v646
    %v648 = vsel %vm593, %v647, %v643
    %v649 = vlaneseq
    %v650 = vshrl.u32 %v649, 7
    %v651 = vsub.s32 %v583, %v650
    %v652 = vrot.slane %v498, %v651
    %v653 = vlaneseq
    %v654 = vshrl.u32 %v653, 7
    %v655 = vsub.s32 %v588, %v654
    %v656 = vrot.slane %v501, %v655
    %v657 = vsel %vm593, %v656, %v652
    %v658 = vlaneseq
    %v659 = vshrl.u32 %v658, 7
    %v660 = vsub.s32 %v583, %v659
    %v661 = vrot.slane %v504, %v660
    %v662 = vlaneseq
    %v663 = vshrl.u32 %v662, 7
    %v664 = vsub.s32 %v588, %v663
    %v665 = vrot.slane %v507, %v664
    %v666 = vsel %vm593, %v665, %v661
    %v667 = vlaneseq
    %v668 = vshrl.u32 %v667, 7
    %v669 = vsub.s32 %v583, %v668
    %v670 = vrot.slane %v510, %v669
    %v671 = vlaneseq
    %v672 = vshrl.u32 %v671, 7
    %v673 = vsub.s32 %v588, %v672
    %v674 = vrot.slane %v513, %v673
    %v675 = vsel %vm593, %v674, %v670
    %v676 = vlaneseq
    %v677 = vshrl.u32 %v676, 7
    %v678 = vsub.s32 %v583, %v677
    %v679 = vrot.slane %v516, %v678
    %v680 = vlaneseq
    %v681 = vshrl.u32 %v680, 7
    %v682 = vsub.s32 %v588, %v681
    %v683 = vrot.slane %v519, %v682
    %v684 = vsel %vm593, %v683, %v679
    %v685 = vlaneseq
    %v686 = vshrl.u32 %v685, 7
    %v687 = vsub.s32 %v583, %v686
    %v688 = vrot.slane %v522, %v687
    %v689 = vlaneseq
    %v690 = vshrl.u32 %v689, 7
    %v691 = vsub.s32 %v588, %v690
    %v692 = vrot.slane %v525, %v691
    %v693 = vsel %vm593, %v692, %v688
    %v694 = vlaneseq
    %v695 = vshrl.u32 %v694, 7
    %v696 = vsub.s32 %v583, %v695
    %v697 = vrot.slane %v528, %v696
    %v698 = vlaneseq
    %v699 = vshrl.u32 %v698, 7
    %v700 = vsub.s32 %v588, %v699
    %v701 = vrot.slane %v531, %v700
    %v702 = vsel %vm593, %v701, %v697
    %v703 = vlaneseq
    %v704 = vshrl.u32 %v703, 7
    %v705 = vsub.s32 %v583, %v704
    %v706 = vrot.slane %v534, %v705
    %v707 = vlaneseq
    %v708 = vshrl.u32 %v707, 7
    %v709 = vsub.s32 %v588, %v708
    %v710 = vrot.slane %v537, %v709
    %v711 = vsel %vm593, %v710, %v706
    %v712 = vlaneseq
    %v713 = vshrl.u32 %v712, 7
    %v714 = vsub.s32 %v583, %v713
    %v715 = vrot.slane %v540, %v714
    %v716 = vlaneseq
    %v717 = vshrl.u32 %v716, 7
    %v718 = vsub.s32 %v588, %v717
    %v719 = vrot.slane %v543, %v718
    %v720 = vsel %vm593, %v719, %v715
    %v721 = vlaneseq
    %v722 = vshrl.u32 %v721, 7
    %v723 = vsub.s32 %v583, %v722
    %v724 = vrot.slane %v546, %v723
    %v725 = vlaneseq
    %v726 = vshrl.u32 %v725, 7
    %v727 = vsub.s32 %v588, %v726
    %v728 = vrot.slane %v549, %v727
    %v729 = vsel %vm593, %v728, %v724
    %vm730 = vcmask 1041409
    %v731 = vsel %vm730, %v603, %v594
    %vm732 = vcmask 1042434
    %v733 = vsel %vm732, %v612, %v731
    %vm734 = vcmask 1043459
    %v735 = vsel %vm734, %v621, %v733
    %vm736 = vcmask 1044484
    %v737 = vsel %vm736, %v630, %v735
    %vm738 = vcmask 1045509
    %v739 = vsel %vm738, %v639, %v737
    %vm740 = vcmask 1046534
    %v741 = vsel %vm740, %v648, %v739
    %vm742 = vcmask 1047559
    %v743 = vsel %vm742, %v657, %v741
    %v744 = vsel %vm730, %v675, %v666
    %v745 = vsel %vm732, %v684, %v744
    %v746 = vsel %vm734, %v693, %v745
    %v747 = vsel %vm736, %v702, %v746
    %v748 = vsel %vm738, %v711, %v747
    %v749 = vsel %vm740, %v720, %v748
    %v750 = vsel %vm742, %v729, %v749
    %vm753 = vcmask 130048
    %v754 = vsel %vm753, %v743, -inf
    %755 = vmax.xlane.f32.xlu0 %v754
    %v756 = vpop.xlane.xlu0 %755
    %v757 = vsel %vm753, %v750, -inf
    %758 = vmax.xlane.f32.xlu0 %v757
    %v759 = vpop.xlane.xlu0 %758
    %v762 = vlaneseq
    %v763 = vshrl.u32 %v762, 7
    %v764 = vsub.s32 0, %v763
    %v765 = vrot.slane %v756, %v764
    %v766 = vlaneseq
    %v767 = vshrl.u32 %v766, 7
    %v768 = vsub.s32 1, %v767
    %v769 = vrot.slane %v756, %v768
    %v770 = vlaneseq
    %v771 = vshrl.u32 %v770, 7
    %v772 = vsub.s32 2, %v771
    %v773 = vrot.slane %v756, %v772
    %v774 = vlaneseq
    %v775 = vshrl.u32 %v774, 7
    %v776 = vsub.s32 3, %v775
    %v777 = vrot.slane %v756, %v776
    %v778 = vlaneseq
    %v779 = vshrl.u32 %v778, 7
    %v780 = vsub.s32 4, %v779
    %v781 = vrot.slane %v756, %v780
    %v782 = vlaneseq
    %v783 = vshrl.u32 %v782, 7
    %v784 = vsub.s32 5, %v783
    %v785 = vrot.slane %v756, %v784
    %v786 = vlaneseq
    %v787 = vshrl.u32 %v786, 7
    %v788 = vsub.s32 6, %v787
    %v789 = vrot.slane %v756, %v788
    %v790 = vlaneseq
    %v791 = vshrl.u32 %v790, 7
    %v792 = vsub.s32 7, %v791
    %v793 = vrot.slane %v756, %v792
    %v794 = vlaneseq
    %v795 = vshrl.u32 %v794, 7
    %v796 = vsub.s32 0, %v795
    %v797 = vrot.slane %v759, %v796
    %v798 = vlaneseq
    %v799 = vshrl.u32 %v798, 7
    %v800 = vsub.s32 1, %v799
    %v801 = vrot.slane %v759, %v800
    %v802 = vlaneseq
    %v803 = vshrl.u32 %v802, 7
    %v804 = vsub.s32 2, %v803
    %v805 = vrot.slane %v759, %v804
    %v806 = vlaneseq
    %v807 = vshrl.u32 %v806, 7
    %v808 = vsub.s32 3, %v807
    %v809 = vrot.slane %v759, %v808
    %v810 = vlaneseq
    %v811 = vshrl.u32 %v810, 7
    %v812 = vsub.s32 4, %v811
    %v813 = vrot.slane %v759, %v812
    %v814 = vlaneseq
    %v815 = vshrl.u32 %v814, 7
    %v816 = vsub.s32 5, %v815
    %v817 = vrot.slane %v759, %v816
    %v818 = vlaneseq
    %v819 = vshrl.u32 %v818, 7
    %v820 = vsub.s32 6, %v819
    %v821 = vrot.slane %v759, %v820
    %v822 = vlaneseq
    %v823 = vshrl.u32 %v822, 7
    %v824 = vsub.s32 7, %v823
    %v825 = vrot.slane %v759, %v824
    %v842 = vsub.f32 %v456, %v765
    %v843 = vsub.f32 %v459, %v765
    %v844 = vsub.f32 %v462, %v769
    %v845 = vsub.f32 %v465, %v769
    %v846 = vsub.f32 %v468, %v773
    %v847 = vsub.f32 %v471, %v773
    %v848 = vsub.f32 %v474, %v777
    %v849 = vsub.f32 %v477, %v777
    %v850 = vsub.f32 %v480, %v781
    %v851 = vsub.f32 %v483, %v781
    %v852 = vsub.f32 %v486, %v785
    %v853 = vsub.f32 %v489, %v785
    %v854 = vsub.f32 %v492, %v789
    %v855 = vsub.f32 %v495, %v789
    %v856 = vsub.f32 %v498, %v793
    %v857 = vsub.f32 %v501, %v793
    %v858 = vsub.f32 %v504, %v797
    %v859 = vsub.f32 %v507, %v797
    %v860 = vsub.f32 %v510, %v801
    %v861 = vsub.f32 %v513, %v801
    %v862 = vsub.f32 %v516, %v805
    %v863 = vsub.f32 %v519, %v805
    %v864 = vsub.f32 %v522, %v809
    %v865 = vsub.f32 %v525, %v809
    %v866 = vsub.f32 %v528, %v813
    %v867 = vsub.f32 %v531, %v813
    %v868 = vsub.f32 %v534, %v817
    %v869 = vsub.f32 %v537, %v817
    %v870 = vsub.f32 %v540, %v821
    %v871 = vsub.f32 %v543, %v821
    %v872 = vsub.f32 %v546, %v825
    %v873 = vsub.f32 %v549, %v825
    %v874 = vmul.f32 %v842, 1.442695
    %v875 = vpow.pop %v874
    %v876 = vmul.f32 %v843, 1.442695
    %v877 = vpow.pop %v876
    %v878 = vmul.f32 %v844, 1.442695
    %v879 = vpow.pop %v878
    %v880 = vmul.f32 %v845, 1.442695
    %v881 = vpow.pop %v880
    %v882 = vmul.f32 %v846, 1.442695
    %v883 = vpow.pop %v882
    %v884 = vmul.f32 %v847, 1.442695
    %v885 = vpow.pop %v884
    %v886 = vmul.f32 %v848, 1.442695
    %v887 = vpow.pop %v886
    %v888 = vmul.f32 %v849, 1.442695
    %v889 = vpow.pop %v888
    %v890 = vmul.f32 %v850, 1.442695
    %v891 = vpow.pop %v890
    %v892 = vmul.f32 %v851, 1.442695
    %v893 = vpow.pop %v892
    %v894 = vmul.f32 %v852, 1.442695
    %v895 = vpow.pop %v894
    %v896 = vmul.f32 %v853, 1.442695
    %v897 = vpow.pop %v896
    %v898 = vmul.f32 %v854, 1.442695
    %v899 = vpow.pop %v898
    %v900 = vmul.f32 %v855, 1.442695
    %v901 = vpow.pop %v900
    %v902 = vmul.f32 %v856, 1.442695
    %v903 = vpow.pop %v902
    %v904 = vmul.f32 %v857, 1.442695
    %v905 = vpow.pop %v904
    %v906 = vmul.f32 %v858, 1.442695
    %v907 = vpow.pop %v906
    %v908 = vmul.f32 %v859, 1.442695
    %v909 = vpow.pop %v908
    %v910 = vmul.f32 %v860, 1.442695
    %v911 = vpow.pop %v910
    %v912 = vmul.f32 %v861, 1.442695
    %v913 = vpow.pop %v912
    %v914 = vmul.f32 %v862, 1.442695
    %v915 = vpow.pop %v914
    %v916 = vmul.f32 %v863, 1.442695
    %v917 = vpow.pop %v916
    %v918 = vmul.f32 %v864, 1.442695
    %v919 = vpow.pop %v918
    %v920 = vmul.f32 %v865, 1.442695
    %v921 = vpow.pop %v920
    %v922 = vmul.f32 %v866, 1.442695
    %v923 = vpow.pop %v922
    %v924 = vmul.f32 %v867, 1.442695
    %v925 = vpow.pop %v924
    %v926 = vmul.f32 %v868, 1.442695
    %v927 = vpow.pop %v926
    %v928 = vmul.f32 %v869, 1.442695
    %v929 = vpow.pop %v928
    %v930 = vmul.f32 %v870, 1.442695
    %v931 = vpow.pop %v930
    %v932 = vmul.f32 %v871, 1.442695
    %v933 = vpow.pop %v932
    %v934 = vmul.f32 %v872, 1.442695
    %v935 = vpow.pop %v934
    %v936 = vmul.f32 %v873, 1.442695
    %v937 = vpow.pop %v936
    %970 = vset.pattern.permute.xlu0 0
    %971 = vperm.xlu0 %970, %v875
    %v972 = vpop.permute.xlu0 %971
    %973 = vset.pattern.permute.xlu0 0
    %974 = vperm.xlu0 %973, %v877
    %v975 = vpop.permute.xlu0 %974
    %976 = vset.pattern.permute.xlu0 0
    %977 = vperm.xlu0 %976, %v879
    %v978 = vpop.permute.xlu0 %977
    %979 = vset.pattern.permute.xlu0 0
    %980 = vperm.xlu0 %979, %v881
    %v981 = vpop.permute.xlu0 %980
    %982 = vset.pattern.permute.xlu0 0
    %983 = vperm.xlu0 %982, %v883
    %v984 = vpop.permute.xlu0 %983
    %985 = vset.pattern.permute.xlu0 0
    %986 = vperm.xlu0 %985, %v885
    %v987 = vpop.permute.xlu0 %986
    %988 = vset.pattern.permute.xlu0 0
    %989 = vperm.xlu0 %988, %v887
    %v990 = vpop.permute.xlu0 %989
    %991 = vset.pattern.permute.xlu0 0
    %992 = vperm.xlu0 %991, %v889
    %v993 = vpop.permute.xlu0 %992
    %994 = vset.pattern.permute.xlu0 0
    %995 = vperm.xlu0 %994, %v891
    %v996 = vpop.permute.xlu0 %995
    %997 = vset.pattern.permute.xlu0 0
    %998 = vperm.xlu0 %997, %v893
    %v999 = vpop.permute.xlu0 %998
    %1000 = vset.pattern.permute.xlu0 0
    %1001 = vperm.xlu0 %1000, %v895
    %v1002 = vpop.permute.xlu0 %1001
    %1003 = vset.pattern.permute.xlu0 0
    %1004 = vperm.xlu0 %1003, %v897
    %v1005 = vpop.permute.xlu0 %1004
    %1006 = vset.pattern.permute.xlu0 0
    %1007 = vperm.xlu0 %1006, %v899
    %v1008 = vpop.permute.xlu0 %1007
    %1009 = vset.pattern.permute.xlu0 0
    %1010 = vperm.xlu0 %1009, %v901
    %v1011 = vpop.permute.xlu0 %1010
    %1012 = vset.pattern.permute.xlu0 0
    %1013 = vperm.xlu0 %1012, %v903
    %v1014 = vpop.permute.xlu0 %1013
    %1015 = vset.pattern.permute.xlu0 0
    %1016 = vperm.xlu0 %1015, %v905
    %v1017 = vpop.permute.xlu0 %1016
    %1018 = vset.pattern.permute.xlu0 0
    %1019 = vperm.xlu0 %1018, %v907
    %v1020 = vpop.permute.xlu0 %1019
    %1021 = vset.pattern.permute.xlu0 0
    %1022 = vperm.xlu0 %1021, %v909
    %v1023 = vpop.permute.xlu0 %1022
    %1024 = vset.pattern.permute.xlu0 0
    %1025 = vperm.xlu0 %1024, %v911
    %v1026 = vpop.permute.xlu0 %1025
    %1027 = vset.pattern.permute.xlu0 0
    %1028 = vperm.xlu0 %1027, %v913
    %v1029 = vpop.permute.xlu0 %1028
    %1030 = vset.pattern.permute.xlu0 0
    %1031 = vperm.xlu0 %1030, %v915
    %v1032 = vpop.permute.xlu0 %1031
    %1033 = vset.pattern.permute.xlu0 0
    %1034 = vperm.xlu0 %1033, %v917
    %v1035 = vpop.permute.xlu0 %1034
    %1036 = vset.pattern.permute.xlu0 0
    %1037 = vperm.xlu0 %1036, %v919
    %v1038 = vpop.permute.xlu0 %1037
    %1039 = vset.pattern.permute.xlu0 0
    %1040 = vperm.xlu0 %1039, %v921
    %v1041 = vpop.permute.xlu0 %1040
    %1042 = vset.pattern.permute.xlu0 0
    %1043 = vperm.xlu0 %1042, %v923
    %v1044 = vpop.permute.xlu0 %1043
    %1045 = vset.pattern.permute.xlu0 0
    %1046 = vperm.xlu0 %1045, %v925
    %v1047 = vpop.permute.xlu0 %1046
    %1048 = vset.pattern.permute.xlu0 0
    %1049 = vperm.xlu0 %1048, %v927
    %v1050 = vpop.permute.xlu0 %1049
    %1051 = vset.pattern.permute.xlu0 0
    %1052 = vperm.xlu0 %1051, %v929
    %v1053 = vpop.permute.xlu0 %1052
    %1054 = vset.pattern.permute.xlu0 0
    %1055 = vperm.xlu0 %1054, %v931
    %v1056 = vpop.permute.xlu0 %1055
    %1057 = vset.pattern.permute.xlu0 0
    %1058 = vperm.xlu0 %1057, %v933
    %v1059 = vpop.permute.xlu0 %1058
    %1060 = vset.pattern.permute.xlu0 0
    %1061 = vperm.xlu0 %1060, %v935
    %v1062 = vpop.permute.xlu0 %1061
    %1063 = vset.pattern.permute.xlu0 0
    %1064 = vperm.xlu0 %1063, %v937
    %v1065 = vpop.permute.xlu0 %1064
    %v1066 = vlaneseq
    %v1067 = vshrl.u32 %v1066, 7
    %v1068 = vsub.s32 %v583, %v1067
    %v1069 = vrot.slane %v972, %v1068
    %v1070 = vlaneseq
    %v1071 = vshrl.u32 %v1070, 7
    %v1072 = vsub.s32 %v588, %v1071
    %v1073 = vrot.slane %v975, %v1072
    %v1074 = vsel %vm593, %v1073, %v1069
    %v1075 = vlaneseq
    %v1076 = vshrl.u32 %v1075, 7
    %v1077 = vsub.s32 %v583, %v1076
    %v1078 = vrot.slane %v978, %v1077
    %v1079 = vlaneseq
    %v1080 = vshrl.u32 %v1079, 7
    %v1081 = vsub.s32 %v588, %v1080
    %v1082 = vrot.slane %v981, %v1081
    %v1083 = vsel %vm593, %v1082, %v1078
    %v1084 = vlaneseq
    %v1085 = vshrl.u32 %v1084, 7
    %v1086 = vsub.s32 %v583, %v1085
    %v1087 = vrot.slane %v984, %v1086
    %v1088 = vlaneseq
    %v1089 = vshrl.u32 %v1088, 7
    %v1090 = vsub.s32 %v588, %v1089
    %v1091 = vrot.slane %v987, %v1090
    %v1092 = vsel %vm593, %v1091, %v1087
    %v1093 = vlaneseq
    %v1094 = vshrl.u32 %v1093, 7
    %v1095 = vsub.s32 %v583, %v1094
    %v1096 = vrot.slane %v990, %v1095
    %v1097 = vlaneseq
    %v1098 = vshrl.u32 %v1097, 7
    %v1099 = vsub.s32 %v588, %v1098
    %v1100 = vrot.slane %v993, %v1099
    %v1101 = vsel %vm593, %v1100, %v1096
    %v1102 = vlaneseq
    %v1103 = vshrl.u32 %v1102, 7
    %v1104 = vsub.s32 %v583, %v1103
    %v1105 = vrot.slane %v996, %v1104
    %v1106 = vlaneseq
    %v1107 = vshrl.u32 %v1106, 7
    %v1108 = vsub.s32 %v588, %v1107
    %v1109 = vrot.slane %v999, %v1108
    %v1110 = vsel %vm593, %v1109, %v1105
    %v1111 = vlaneseq
    %v1112 = vshrl.u32 %v1111, 7
    %v1113 = vsub.s32 %v583, %v1112
    %v1114 = vrot.slane %v1002, %v1113
    %v1115 = vlaneseq
    %v1116 = vshrl.u32 %v1115, 7
    %v1117 = vsub.s32 %v588, %v1116
    %v1118 = vrot.slane %v1005, %v1117
    %v1119 = vsel %vm593, %v1118, %v1114
    %v1120 = vlaneseq
    %v1121 = vshrl.u32 %v1120, 7
    %v1122 = vsub.s32 %v583, %v1121
    %v1123 = vrot.slane %v1008, %v1122
    %v1124 = vlaneseq
    %v1125 = vshrl.u32 %v1124, 7
    %v1126 = vsub.s32 %v588, %v1125
    %v1127 = vrot.slane %v1011, %v1126
    %v1128 = vsel %vm593, %v1127, %v1123
    %v1129 = vlaneseq
    %v1130 = vshrl.u32 %v1129, 7
    %v1131 = vsub.s32 %v583, %v1130
    %v1132 = vrot.slane %v1014, %v1131
    %v1133 = vlaneseq
    %v1134 = vshrl.u32 %v1133, 7
    %v1135 = vsub.s32 %v588, %v1134
    %v1136 = vrot.slane %v1017, %v1135
    %v1137 = vsel %vm593, %v1136, %v1132
    %v1138 = vlaneseq
    %v1139 = vshrl.u32 %v1138, 7
    %v1140 = vsub.s32 %v583, %v1139
    %v1141 = vrot.slane %v1020, %v1140
    %v1142 = vlaneseq
    %v1143 = vshrl.u32 %v1142, 7
    %v1144 = vsub.s32 %v588, %v1143
    %v1145 = vrot.slane %v1023, %v1144
    %v1146 = vsel %vm593, %v1145, %v1141
    %v1147 = vlaneseq
    %v1148 = vshrl.u32 %v1147, 7
    %v1149 = vsub.s32 %v583, %v1148
    %v1150 = vrot.slane %v1026, %v1149
    %v1151 = vlaneseq
    %v1152 = vshrl.u32 %v1151, 7
    %v1153 = vsub.s32 %v588, %v1152
    %v1154 = vrot.slane %v1029, %v1153
    %v1155 = vsel %vm593, %v1154, %v1150
    %v1156 = vlaneseq
    %v1157 = vshrl.u32 %v1156, 7
    %v1158 = vsub.s32 %v583, %v1157
    %v1159 = vrot.slane %v1032, %v1158
    %v1160 = vlaneseq
    %v1161 = vshrl.u32 %v1160, 7
    %v1162 = vsub.s32 %v588, %v1161
    %v1163 = vrot.slane %v1035, %v1162
    %v1164 = vsel %vm593, %v1163, %v1159
    %v1165 = vlaneseq
    %v1166 = vshrl.u32 %v1165, 7
    %v1167 = vsub.s32 %v583, %v1166
    %v1168 = vrot.slane %v1038, %v1167
    %v1169 = vlaneseq
    %v1170 = vshrl.u32 %v1169, 7
    %v1171 = vsub.s32 %v588, %v1170
    %v1172 = vrot.slane %v1041, %v1171
    %v1173 = vsel %vm593, %v1172, %v1168
    %v1174 = vlaneseq
    %v1175 = vshrl.u32 %v1174, 7
    %v1176 = vsub.s32 %v583, %v1175
    %v1177 = vrot.slane %v1044, %v1176
    %v1178 = vlaneseq
    %v1179 = vshrl.u32 %v1178, 7
    %v1180 = vsub.s32 %v588, %v1179
    %v1181 = vrot.slane %v1047, %v1180
    %v1182 = vsel %vm593, %v1181, %v1177
    %v1183 = vlaneseq
    %v1184 = vshrl.u32 %v1183, 7
    %v1185 = vsub.s32 %v583, %v1184
    %v1186 = vrot.slane %v1050, %v1185
    %v1187 = vlaneseq
    %v1188 = vshrl.u32 %v1187, 7
    %v1189 = vsub.s32 %v588, %v1188
    %v1190 = vrot.slane %v1053, %v1189
    %v1191 = vsel %vm593, %v1190, %v1186
    %v1192 = vlaneseq
    %v1193 = vshrl.u32 %v1192, 7
    %v1194 = vsub.s32 %v583, %v1193
    %v1195 = vrot.slane %v1056, %v1194
    %v1196 = vlaneseq
    %v1197 = vshrl.u32 %v1196, 7
    %v1198 = vsub.s32 %v588, %v1197
    %v1199 = vrot.slane %v1059, %v1198
    %v1200 = vsel %vm593, %v1199, %v1195
    %v1201 = vlaneseq
    %v1202 = vshrl.u32 %v1201, 7
    %v1203 = vsub.s32 %v583, %v1202
    %v1204 = vrot.slane %v1062, %v1203
    %v1205 = vlaneseq
    %v1206 = vshrl.u32 %v1205, 7
    %v1207 = vsub.s32 %v588, %v1206
    %v1208 = vrot.slane %v1065, %v1207
    %v1209 = vsel %vm593, %v1208, %v1204
    %v1210 = vsel %vm730, %v1083, %v1074
    %v1211 = vsel %vm732, %v1092, %v1210
    %v1212 = vsel %vm734, %v1101, %v1211
    %v1213 = vsel %vm736, %v1110, %v1212
    %v1214 = vsel %vm738, %v1119, %v1213
    %v1215 = vsel %vm740, %v1128, %v1214
    %v1216 = vsel %vm742, %v1137, %v1215
    %v1217 = vsel %vm730, %v1155, %v1146
    %v1218 = vsel %vm732, %v1164, %v1217
    %v1219 = vsel %vm734, %v1173, %v1218
    %v1220 = vsel %vm736, %v1182, %v1219
    %v1221 = vsel %vm738, %v1191, %v1220
    %v1222 = vsel %vm740, %v1200, %v1221
    %v1223 = vsel %vm742, %v1209, %v1222
    %v1226 = vsel %vm753, %v1216, 0.0
    %1227 = vadd.xlane.f32.xlu0 %v1226
    %v1228 = vpop.xlane.xlu0 %1227
    %v1229 = vsel %vm753, %v1223, 0.0
    %1230 = vadd.xlane.f32.xlu0 %v1229
    %v1231 = vpop.xlane.xlu0 %1230
    %v1232 = vrcp.pop %v1228
    %v1233 = vrcp.pop %v1231
    %v1236 = vlaneseq
    %v1237 = vshrl.u32 %v1236, 7
    %v1238 = vsub.s32 0, %v1237
    %v1239 = vrot.slane %v1232, %v1238
    %v1240 = vlaneseq
    %v1241 = vshrl.u32 %v1240, 7
    %v1242 = vsub.s32 1, %v1241
    %v1243 = vrot.slane %v1232, %v1242
    %v1244 = vlaneseq
    %v1245 = vshrl.u32 %v1244, 7
    %v1246 = vsub.s32 2, %v1245
    %v1247 = vrot.slane %v1232, %v1246
    %v1248 = vlaneseq
    %v1249 = vshrl.u32 %v1248, 7
    %v1250 = vsub.s32 3, %v1249
    %v1251 = vrot.slane %v1232, %v1250
    %v1252 = vlaneseq
    %v1253 = vshrl.u32 %v1252, 7
    %v1254 = vsub.s32 4, %v1253
    %v1255 = vrot.slane %v1232, %v1254
    %v1256 = vlaneseq
    %v1257 = vshrl.u32 %v1256, 7
    %v1258 = vsub.s32 5, %v1257
    %v1259 = vrot.slane %v1232, %v1258
    %v1260 = vlaneseq
    %v1261 = vshrl.u32 %v1260, 7
    %v1262 = vsub.s32 6, %v1261
    %v1263 = vrot.slane %v1232, %v1262
    %v1264 = vlaneseq
    %v1265 = vshrl.u32 %v1264, 7
    %v1266 = vsub.s32 7, %v1265
    %v1267 = vrot.slane %v1232, %v1266
    %v1268 = vlaneseq
    %v1269 = vshrl.u32 %v1268, 7
    %v1270 = vsub.s32 0, %v1269
    %v1271 = vrot.slane %v1233, %v1270
    %v1272 = vlaneseq
    %v1273 = vshrl.u32 %v1272, 7
    %v1274 = vsub.s32 1, %v1273
    %v1275 = vrot.slane %v1233, %v1274
    %v1276 = vlaneseq
    %v1277 = vshrl.u32 %v1276, 7
    %v1278 = vsub.s32 2, %v1277
    %v1279 = vrot.slane %v1233, %v1278
    %v1280 = vlaneseq
    %v1281 = vshrl.u32 %v1280, 7
    %v1282 = vsub.s32 3, %v1281
    %v1283 = vrot.slane %v1233, %v1282
    %v1284 = vlaneseq
    %v1285 = vshrl.u32 %v1284, 7
    %v1286 = vsub.s32 4, %v1285
    %v1287 = vrot.slane %v1233, %v1286
    %v1288 = vlaneseq
    %v1289 = vshrl.u32 %v1288, 7
    %v1290 = vsub.s32 5, %v1289
    %v1291 = vrot.slane %v1233, %v1290
    %v1292 = vlaneseq
    %v1293 = vshrl.u32 %v1292, 7
    %v1294 = vsub.s32 6, %v1293
    %v1295 = vrot.slane %v1233, %v1294
    %v1296 = vlaneseq
    %v1297 = vshrl.u32 %v1296, 7
    %v1298 = vsub.s32 7, %v1297
    %v1299 = vrot.slane %v1233, %v1298
    %v1316 = vmul.f32 %v875, %v1239
    %v1317 = vmul.f32 %v877, %v1239
    %v1318 = vmul.f32 %v879, %v1243
    %v1319 = vmul.f32 %v881, %v1243
    %v1320 = vmul.f32 %v883, %v1247
    %v1321 = vmul.f32 %v885, %v1247
    %v1322 = vmul.f32 %v887, %v1251
    %v1323 = vmul.f32 %v889, %v1251
    %v1324 = vmul.f32 %v891, %v1255
    %v1325 = vmul.f32 %v893, %v1255
    %v1326 = vmul.f32 %v895, %v1259
    %v1327 = vmul.f32 %v897, %v1259
    %v1328 = vmul.f32 %v899, %v1263
    %v1329 = vmul.f32 %v901, %v1263
    %v1330 = vmul.f32 %v903, %v1267
    %v1331 = vmul.f32 %v905, %v1267
    %v1332 = vmul.f32 %v907, %v1271
    %v1333 = vmul.f32 %v909, %v1271
    %v1334 = vmul.f32 %v911, %v1275
    %v1335 = vmul.f32 %v913, %v1275
    %v1336 = vmul.f32 %v915, %v1279
    %v1337 = vmul.f32 %v917, %v1279
    %v1338 = vmul.f32 %v919, %v1283
    %v1339 = vmul.f32 %v921, %v1283
    %v1340 = vmul.f32 %v923, %v1287
    %v1341 = vmul.f32 %v925, %v1287
    %v1342 = vmul.f32 %v927, %v1291
    %v1343 = vmul.f32 %v929, %v1291
    %v1344 = vmul.f32 %v931, %v1295
    %v1345 = vmul.f32 %v933, %v1295
    %v1346 = vmul.f32 %v935, %v1299
    %v1347 = vmul.f32 %v937, %v1299
    %1349 = vset.pattern.permute.xlu0 0
    %1350 = vperm.xlu0 %1349, %v1316
    %v1351 = vpop.permute.xlu0 %1350
    %1354 = vset.pattern.permute.xlu0 0
    %1355 = vperm.xlu0 %1354, %v1317
    %v1356 = vpop.permute.xlu0 %1355
    %1359 = vset.pattern.permute.xlu0 0
    %1360 = vperm.xlu0 %1359, %v1318
    %v1361 = vpop.permute.xlu0 %1360
    %1364 = vset.pattern.permute.xlu0 0
    %1365 = vperm.xlu0 %1364, %v1319
    %v1366 = vpop.permute.xlu0 %1365
    %1369 = vset.pattern.permute.xlu0 0
    %1370 = vperm.xlu0 %1369, %v1320
    %v1371 = vpop.permute.xlu0 %1370
    %1374 = vset.pattern.permute.xlu0 0
    %1375 = vperm.xlu0 %1374, %v1321
    %v1376 = vpop.permute.xlu0 %1375
    %1379 = vset.pattern.permute.xlu0 0
    %1380 = vperm.xlu0 %1379, %v1322
    %v1381 = vpop.permute.xlu0 %1380
    %1384 = vset.pattern.permute.xlu0 0
    %1385 = vperm.xlu0 %1384, %v1323
    %v1386 = vpop.permute.xlu0 %1385
    %1389 = vset.pattern.permute.xlu0 0
    %1390 = vperm.xlu0 %1389, %v1324
    %v1391 = vpop.permute.xlu0 %1390
    %1394 = vset.pattern.permute.xlu0 0
    %1395 = vperm.xlu0 %1394, %v1325
    %v1396 = vpop.permute.xlu0 %1395
    %1399 = vset.pattern.permute.xlu0 0
    %1400 = vperm.xlu0 %1399, %v1326
    %v1401 = vpop.permute.xlu0 %1400
    %1404 = vset.pattern.permute.xlu0 0
    %1405 = vperm.xlu0 %1404, %v1327
    %v1406 = vpop.permute.xlu0 %1405
    %1409 = vset.pattern.permute.xlu0 0
    %1410 = vperm.xlu0 %1409, %v1328
    %v1411 = vpop.permute.xlu0 %1410
    %1414 = vset.pattern.permute.xlu0 0
    %1415 = vperm.xlu0 %1414, %v1329
    %v1416 = vpop.permute.xlu0 %1415
    %1419 = vset.pattern.permute.xlu0 0
    %1420 = vperm.xlu0 %1419, %v1330
    %v1421 = vpop.permute.xlu0 %1420
    %1424 = vset.pattern.permute.xlu0 0
    %1425 = vperm.xlu0 %1424, %v1331
    %v1426 = vpop.permute.xlu0 %1425
    %1429 = vset.pattern.permute.xlu0 0
    %1430 = vperm.xlu0 %1429, %v1332
    %v1431 = vpop.permute.xlu0 %1430
    %1434 = vset.pattern.permute.xlu0 0
    %1435 = vperm.xlu0 %1434, %v1333
    %v1436 = vpop.permute.xlu0 %1435
    %1439 = vset.pattern.permute.xlu0 0
    %1440 = vperm.xlu0 %1439, %v1334
    %v1441 = vpop.permute.xlu0 %1440
    %1444 = vset.pattern.permute.xlu0 0
    %1445 = vperm.xlu0 %1444, %v1335
    %v1446 = vpop.permute.xlu0 %1445
    %1449 = vset.pattern.permute.xlu0 0
    %1450 = vperm.xlu0 %1449, %v1336
    %v1451 = vpop.permute.xlu0 %1450
    %1454 = vset.pattern.permute.xlu0 0
    %1455 = vperm.xlu0 %1454, %v1337
    %v1456 = vpop.permute.xlu0 %1455
    %1459 = vset.pattern.permute.xlu0 0
    %1460 = vperm.xlu0 %1459, %v1338
    %v1461 = vpop.permute.xlu0 %1460
    %1464 = vset.pattern.permute.xlu0 0
    %1465 = vperm.xlu0 %1464, %v1339
    %v1466 = vpop.permute.xlu0 %1465
    %1469 = vset.pattern.permute.xlu0 0
    %1470 = vperm.xlu0 %1469, %v1340
    %v1471 = vpop.permute.xlu0 %1470
    %1474 = vset.pattern.permute.xlu0 0
    %1475 = vperm.xlu0 %1474, %v1341
    %v1476 = vpop.permute.xlu0 %1475
    %1479 = vset.pattern.permute.xlu0 0
    %1480 = vperm.xlu0 %1479, %v1342
    %v1481 = vpop.permute.xlu0 %1480
    %1484 = vset.pattern.permute.xlu0 0
    %1485 = vperm.xlu0 %1484, %v1343
    %v1486 = vpop.permute.xlu0 %1485
    %1489 = vset.pattern.permute.xlu0 0
    %1490 = vperm.xlu0 %1489, %v1344
    %v1491 = vpop.permute.xlu0 %1490
    %1494 = vset.pattern.permute.xlu0 0
    %1495 = vperm.xlu0 %1494, %v1345
    %v1496 = vpop.permute.xlu0 %1495
    %1499 = vset.pattern.permute.xlu0 0
    %1500 = vperm.xlu0 %1499, %v1346
    %v1501 = vpop.permute.xlu0 %1500
    %1504 = vset.pattern.permute.xlu0 0
    %1505 = vperm.xlu0 %1504, %v1347
    %v1506 = vpop.permute.xlu0 %1505
    %v1508 = vmul.f32 %v1351, %v20
    %v1509 = vmul.f32 %v1356, %v21
    %v1510 = vmul.f32 %v1361, %v22
    %v1511 = vmul.f32 %v1366, %v23
    %v1512 = vmul.f32 %v1371, %v24
    %v1513 = vmul.f32 %v1376, %v25
    %v1514 = vmul.f32 %v1381, %v26
    %v1515 = vmul.f32 %v1386, %v27
    %v1516 = vmul.f32 %v1391, %v28
    %v1517 = vmul.f32 %v1396, %v29
    %v1518 = vmul.f32 %v1401, %v30
    %v1519 = vmul.f32 %v1406, %v31
    %v1520 = vmul.f32 %v1411, %v32
    %v1521 = vmul.f32 %v1416, %v33
    %v1522 = vmul.f32 %v1421, %v34
    %v1523 = vmul.f32 %v1426, %v35
    %v1524 = vmul.f32 %v1431, %v36
    %v1525 = vmul.f32 %v1436, %v37
    %v1526 = vmul.f32 %v1441, %v38
    %v1527 = vmul.f32 %v1446, %v39
    %v1528 = vmul.f32 %v1451, %v40
    %v1529 = vmul.f32 %v1456, %v41
    %v1530 = vmul.f32 %v1461, %v42
    %v1531 = vmul.f32 %v1466, %v43
    %v1532 = vmul.f32 %v1471, %v44
    %v1533 = vmul.f32 %v1476, %v45
    %v1534 = vmul.f32 %v1481, %v46
    %v1535 = vmul.f32 %v1486, %v47
    %v1536 = vmul.f32 %v1491, %v48
    %v1537 = vmul.f32 %v1496, %v49
    %v1538 = vmul.f32 %v1501, %v50
    %v1539 = vmul.f32 %v1506, %v51
    %v1540 = vsel %vm60, %v1508, 0.0
    %v1541 = vsel %vm60, %v1509, 0.0
    %v1542 = vadd.f32 %v1540, %v1541
    %v1543 = vrot.slane %v1542, 4
    %v1544 = vadd.f32 %v1542, %v1543
    %v1545 = vrot.slane %v1544, 2
    %v1546 = vadd.f32 %v1544, %v1545
    %v1547 = vrot.slane %v1546, 1
    %v1548 = vadd.f32 %v1546, %v1547
    %v1549 = vsel %vm60, %v1510, 0.0
    %v1550 = vsel %vm60, %v1511, 0.0
    %v1551 = vadd.f32 %v1549, %v1550
    %v1552 = vrot.slane %v1551, 4
    %v1553 = vadd.f32 %v1551, %v1552
    %v1554 = vrot.slane %v1553, 2
    %v1555 = vadd.f32 %v1553, %v1554
    %v1556 = vrot.slane %v1555, 1
    %v1557 = vadd.f32 %v1555, %v1556
    %v1558 = vsel %vm60, %v1512, 0.0
    %v1559 = vsel %vm60, %v1513, 0.0
    %v1560 = vadd.f32 %v1558, %v1559
    %v1561 = vrot.slane %v1560, 4
    %v1562 = vadd.f32 %v1560, %v1561
    %v1563 = vrot.slane %v1562, 2
    %v1564 = vadd.f32 %v1562, %v1563
    %v1565 = vrot.slane %v1564, 1
    %v1566 = vadd.f32 %v1564, %v1565
    %v1567 = vsel %vm60, %v1514, 0.0
    %v1568 = vsel %vm60, %v1515, 0.0
    %v1569 = vadd.f32 %v1567, %v1568
    %v1570 = vrot.slane %v1569, 4
    %v1571 = vadd.f32 %v1569, %v1570
    %v1572 = vrot.slane %v1571, 2
    %v1573 = vadd.f32 %v1571, %v1572
    %v1574 = vrot.slane %v1573, 1
    %v1575 = vadd.f32 %v1573, %v1574
    %v1576 = vsel %vm60, %v1516, 0.0
    %v1577 = vsel %vm60, %v1517, 0.0
    %v1578 = vadd.f32 %v1576, %v1577
    %v1579 = vrot.slane %v1578, 4
    %v1580 = vadd.f32 %v1578, %v1579
    %v1581 = vrot.slane %v1580, 2
    %v1582 = vadd.f32 %v1580, %v1581
    %v1583 = vrot.slane %v1582, 1
    %v1584 = vadd.f32 %v1582, %v1583
    %v1585 = vsel %vm60, %v1518, 0.0
    %v1586 = vsel %vm60, %v1519, 0.0
    %v1587 = vadd.f32 %v1585, %v1586
    %v1588 = vrot.slane %v1587, 4
    %v1589 = vadd.f32 %v1587, %v1588
    %v1590 = vrot.slane %v1589, 2
    %v1591 = vadd.f32 %v1589, %v1590
    %v1592 = vrot.slane %v1591, 1
    %v1593 = vadd.f32 %v1591, %v1592
    %v1594 = vsel %vm60, %v1520, 0.0
    %v1595 = vsel %vm60, %v1521, 0.0
    %v1596 = vadd.f32 %v1594, %v1595
    %v1597 = vrot.slane %v1596, 4
    %v1598 = vadd.f32 %v1596, %v1597
    %v1599 = vrot.slane %v1598, 2
    %v1600 = vadd.f32 %v1598, %v1599
    %v1601 = vrot.slane %v1600, 1
    %v1602 = vadd.f32 %v1600, %v1601
    %v1603 = vsel %vm60, %v1522, 0.0
    %v1604 = vsel %vm60, %v1523, 0.0
    %v1605 = vadd.f32 %v1603, %v1604
    %v1606 = vrot.slane %v1605, 4
    %v1607 = vadd.f32 %v1605, %v1606
    %v1608 = vrot.slane %v1607, 2
    %v1609 = vadd.f32 %v1607, %v1608
    %v1610 = vrot.slane %v1609, 1
    %v1611 = vadd.f32 %v1609, %v1610
    %v1612 = vsel %vm60, %v1524, 0.0
    %v1613 = vsel %vm60, %v1525, 0.0
    %v1614 = vadd.f32 %v1612, %v1613
    %v1615 = vrot.slane %v1614, 4
    %v1616 = vadd.f32 %v1614, %v1615
    %v1617 = vrot.slane %v1616, 2
    %v1618 = vadd.f32 %v1616, %v1617
    %v1619 = vrot.slane %v1618, 1
    %v1620 = vadd.f32 %v1618, %v1619
    %v1621 = vsel %vm60, %v1526, 0.0
    %v1622 = vsel %vm60, %v1527, 0.0
    %v1623 = vadd.f32 %v1621, %v1622
    %v1624 = vrot.slane %v1623, 4
    %v1625 = vadd.f32 %v1623, %v1624
    %v1626 = vrot.slane %v1625, 2
    %v1627 = vadd.f32 %v1625, %v1626
    %v1628 = vrot.slane %v1627, 1
    %v1629 = vadd.f32 %v1627, %v1628
    %v1630 = vsel %vm60, %v1528, 0.0
    %v1631 = vsel %vm60, %v1529, 0.0
    %v1632 = vadd.f32 %v1630, %v1631
    %v1633 = vrot.slane %v1632, 4
    %v1634 = vadd.f32 %v1632, %v1633
    %v1635 = vrot.slane %v1634, 2
    %v1636 = vadd.f32 %v1634, %v1635
    %v1637 = vrot.slane %v1636, 1
    %v1638 = vadd.f32 %v1636, %v1637
    %v1639 = vsel %vm60, %v1530, 0.0
    %v1640 = vsel %vm60, %v1531, 0.0
    %v1641 = vadd.f32 %v1639, %v1640
    %v1642 = vrot.slane %v1641, 4
    %v1643 = vadd.f32 %v1641, %v1642
    %v1644 = vrot.slane %v1643, 2
    %v1645 = vadd.f32 %v1643, %v1644
    %v1646 = vrot.slane %v1645, 1
    %v1647 = vadd.f32 %v1645, %v1646
    %v1648 = vsel %vm60, %v1532, 0.0
    %v1649 = vsel %vm60, %v1533, 0.0
    %v1650 = vadd.f32 %v1648, %v1649
    %v1651 = vrot.slane %v1650, 4
    %v1652 = vadd.f32 %v1650, %v1651
    %v1653 = vrot.slane %v1652, 2
    %v1654 = vadd.f32 %v1652, %v1653
    %v1655 = vrot.slane %v1654, 1
    %v1656 = vadd.f32 %v1654, %v1655
    %v1657 = vsel %vm60, %v1534, 0.0
    %v1658 = vsel %vm60, %v1535, 0.0
    %v1659 = vadd.f32 %v1657, %v1658
    %v1660 = vrot.slane %v1659, 4
    %v1661 = vadd.f32 %v1659, %v1660
    %v1662 = vrot.slane %v1661, 2
    %v1663 = vadd.f32 %v1661, %v1662
    %v1664 = vrot.slane %v1663, 1
    %v1665 = vadd.f32 %v1663, %v1664
    %v1666 = vsel %vm60, %v1536, 0.0
    %v1667 = vsel %vm60, %v1537, 0.0
    %v1668 = vadd.f32 %v1666, %v1667
    %v1669 = vrot.slane %v1668, 4
    %v1670 = vadd.f32 %v1668, %v1669
    %v1671 = vrot.slane %v1670, 2
    %v1672 = vadd.f32 %v1670, %v1671
    %v1673 = vrot.slane %v1672, 1
    %v1674 = vadd.f32 %v1672, %v1673
    %v1675 = vsel %vm60, %v1538, 0.0
    %v1676 = vsel %vm60, %v1539, 0.0
    %v1677 = vadd.f32 %v1675, %v1676
    %v1678 = vrot.slane %v1677, 4
    %v1679 = vadd.f32 %v1677, %v1678
    %v1680 = vrot.slane %v1679, 2
    %v1681 = vadd.f32 %v1679, %v1680
    %v1682 = vrot.slane %v1681, 1
    %v1683 = vadd.f32 %v1681, %v1682
    %v1700 = vsel %vm730, %v1557, %v1548
    %v1701 = vsel %vm732, %v1566, %v1700
    %v1702 = vsel %vm734, %v1575, %v1701
    %v1703 = vsel %vm736, %v1584, %v1702
    %v1704 = vsel %vm738, %v1593, %v1703
    %v1705 = vsel %vm740, %v1602, %v1704
    %v1706 = vsel %vm742, %v1611, %v1705
    %v1707 = vsel %vm730, %v1629, %v1620
    %v1708 = vsel %vm732, %v1638, %v1707
    %v1709 = vsel %vm734, %v1647, %v1708
    %v1710 = vsel %vm736, %v1656, %v1709
    %v1711 = vsel %vm738, %v1665, %v1710
    %v1712 = vsel %vm740, %v1674, %v1711
    %v1713 = vsel %vm742, %v1683, %v1712
    %1716 = vst.msk [vmem:[%s4] sm:$0xff] %vm60, %v1706
    %1717 = vst.msk [vmem:[%s4 + $0x8] sm:$0xff] %vm60, %v1713
    %v1718 = vlaneseq
    %v1719 = vshrl.u32 %v1718, 7
    %v1720 = vsub.s32 %v583, %v1719
    %v1721 = vrot.slane %v1351, %v1720
    %v1722 = vlaneseq
    %v1723 = vshrl.u32 %v1722, 7
    %v1724 = vsub.s32 %v588, %v1723
    %v1725 = vrot.slane %v1356, %v1724
    %v1726 = vsel %vm593, %v1725, %v1721
    %v1727 = vlaneseq
    %v1728 = vshrl.u32 %v1727, 7
    %v1729 = vsub.s32 %v583, %v1728
    %v1730 = vrot.slane %v1361, %v1729
    %v1731 = vlaneseq
    %v1732 = vshrl.u32 %v1731, 7
    %v1733 = vsub.s32 %v588, %v1732
    %v1734 = vrot.slane %v1366, %v1733
    %v1735 = vsel %vm593, %v1734, %v1730
    %v1736 = vlaneseq
    %v1737 = vshrl.u32 %v1736, 7
    %v1738 = vsub.s32 %v583, %v1737
    %v1739 = vrot.slane %v1371, %v1738
    %v1740 = vlaneseq
    %v1741 = vshrl.u32 %v1740, 7
    %v1742 = vsub.s32 %v588, %v1741
    %v1743 = vrot.slane %v1376, %v1742
    %v1744 = vsel %vm593, %v1743, %v1739
    %v1745 = vlaneseq
    %v1746 = vshrl.u32 %v1745, 7
    %v1747 = vsub.s32 %v583, %v1746
    %v1748 = vrot.slane %v1381, %v1747
    %v1749 = vlaneseq
    %v1750 = vshrl.u32 %v1749, 7
    %v1751 = vsub.s32 %v588, %v1750
    %v1752 = vrot.slane %v1386, %v1751
    %v1753 = vsel %vm593, %v1752, %v1748
    %v1754 = vlaneseq
    %v1755 = vshrl.u32 %v1754, 7
    %v1756 = vsub.s32 %v583, %v1755
    %v1757 = vrot.slane %v1391, %v1756
    %v1758 = vlaneseq
    %v1759 = vshrl.u32 %v1758, 7
    %v1760 = vsub.s32 %v588, %v1759
    %v1761 = vrot.slane %v1396, %v1760
    %v1762 = vsel %vm593, %v1761, %v1757
    %v1763 = vlaneseq
    %v1764 = vshrl.u32 %v1763, 7
    %v1765 = vsub.s32 %v583, %v1764
    %v1766 = vrot.slane %v1401, %v1765
    %v1767 = vlaneseq
    %v1768 = vshrl.u32 %v1767, 7
    %v1769 = vsub.s32 %v588, %v1768
    %v1770 = vrot.slane %v1406, %v1769
    %v1771 = vsel %vm593, %v1770, %v1766
    %v1772 = vlaneseq
    %v1773 = vshrl.u32 %v1772, 7
    %v1774 = vsub.s32 %v583, %v1773
    %v1775 = vrot.slane %v1411, %v1774
    %v1776 = vlaneseq
    %v1777 = vshrl.u32 %v1776, 7
    %v1778 = vsub.s32 %v588, %v1777
    %v1779 = vrot.slane %v1416, %v1778
    %v1780 = vsel %vm593, %v1779, %v1775
    %v1781 = vlaneseq
    %v1782 = vshrl.u32 %v1781, 7
    %v1783 = vsub.s32 %v583, %v1782
    %v1784 = vrot.slane %v1421, %v1783
    %v1785 = vlaneseq
    %v1786 = vshrl.u32 %v1785, 7
    %v1787 = vsub.s32 %v588, %v1786
    %v1788 = vrot.slane %v1426, %v1787
    %v1789 = vsel %vm593, %v1788, %v1784
    %v1790 = vlaneseq
    %v1791 = vshrl.u32 %v1790, 7
    %v1792 = vsub.s32 %v583, %v1791
    %v1793 = vrot.slane %v1431, %v1792
    %v1794 = vlaneseq
    %v1795 = vshrl.u32 %v1794, 7
    %v1796 = vsub.s32 %v588, %v1795
    %v1797 = vrot.slane %v1436, %v1796
    %v1798 = vsel %vm593, %v1797, %v1793
    %v1799 = vlaneseq
    %v1800 = vshrl.u32 %v1799, 7
    %v1801 = vsub.s32 %v583, %v1800
    %v1802 = vrot.slane %v1441, %v1801
    %v1803 = vlaneseq
    %v1804 = vshrl.u32 %v1803, 7
    %v1805 = vsub.s32 %v588, %v1804
    %v1806 = vrot.slane %v1446, %v1805
    %v1807 = vsel %vm593, %v1806, %v1802
    %v1808 = vlaneseq
    %v1809 = vshrl.u32 %v1808, 7
    %v1810 = vsub.s32 %v583, %v1809
    %v1811 = vrot.slane %v1451, %v1810
    %v1812 = vlaneseq
    %v1813 = vshrl.u32 %v1812, 7
    %v1814 = vsub.s32 %v588, %v1813
    %v1815 = vrot.slane %v1456, %v1814
    %v1816 = vsel %vm593, %v1815, %v1811
    %v1817 = vlaneseq
    %v1818 = vshrl.u32 %v1817, 7
    %v1819 = vsub.s32 %v583, %v1818
    %v1820 = vrot.slane %v1461, %v1819
    %v1821 = vlaneseq
    %v1822 = vshrl.u32 %v1821, 7
    %v1823 = vsub.s32 %v588, %v1822
    %v1824 = vrot.slane %v1466, %v1823
    %v1825 = vsel %vm593, %v1824, %v1820
    %v1826 = vlaneseq
    %v1827 = vshrl.u32 %v1826, 7
    %v1828 = vsub.s32 %v583, %v1827
    %v1829 = vrot.slane %v1471, %v1828
    %v1830 = vlaneseq
    %v1831 = vshrl.u32 %v1830, 7
    %v1832 = vsub.s32 %v588, %v1831
    %v1833 = vrot.slane %v1476, %v1832
    %v1834 = vsel %vm593, %v1833, %v1829
    %v1835 = vlaneseq
    %v1836 = vshrl.u32 %v1835, 7
    %v1837 = vsub.s32 %v583, %v1836
    %v1838 = vrot.slane %v1481, %v1837
    %v1839 = vlaneseq
    %v1840 = vshrl.u32 %v1839, 7
    %v1841 = vsub.s32 %v588, %v1840
    %v1842 = vrot.slane %v1486, %v1841
    %v1843 = vsel %vm593, %v1842, %v1838
    %v1844 = vlaneseq
    %v1845 = vshrl.u32 %v1844, 7
    %v1846 = vsub.s32 %v583, %v1845
    %v1847 = vrot.slane %v1491, %v1846
    %v1848 = vlaneseq
    %v1849 = vshrl.u32 %v1848, 7
    %v1850 = vsub.s32 %v588, %v1849
    %v1851 = vrot.slane %v1496, %v1850
    %v1852 = vsel %vm593, %v1851, %v1847
    %v1853 = vlaneseq
    %v1854 = vshrl.u32 %v1853, 7
    %v1855 = vsub.s32 %v583, %v1854
    %v1856 = vrot.slane %v1501, %v1855
    %v1857 = vlaneseq
    %v1858 = vshrl.u32 %v1857, 7
    %v1859 = vsub.s32 %v588, %v1858
    %v1860 = vrot.slane %v1506, %v1859
    %v1861 = vsel %vm593, %v1860, %v1856
    %v1862 = vsel %vm730, %v1735, %v1726
    %v1863 = vsel %vm732, %v1744, %v1862
    %v1864 = vsel %vm734, %v1753, %v1863
    %v1865 = vsel %vm736, %v1762, %v1864
    %v1866 = vsel %vm738, %v1771, %v1865
    %v1867 = vsel %vm740, %v1780, %v1866
    %v1868 = vsel %vm742, %v1789, %v1867
    %v1869 = vsel %vm730, %v1807, %v1798
    %v1870 = vsel %vm732, %v1816, %v1869
    %v1871 = vsel %vm734, %v1825, %v1870
    %v1872 = vsel %vm736, %v1834, %v1871
    %v1873 = vsel %vm738, %v1843, %v1872
    %v1874 = vsel %vm740, %v1852, %v1873
    %v1875 = vsel %vm742, %v1861, %v1874
    %1878 = vst.msk [vmem:[#allocation2] sm:$0xff] %vm753, %v1868
    %1879 = vst.msk [vmem:[#allocation2 + $0x8] sm:$0xff] %vm753, %v1875
    // Predicated region
    $region18: #{tpu_custom_call.1} parent=1 // pred_check
      _
    $region19: #{tpu_custom_call.1} parent=1 // pred_check_branch
      %1881 = sbr.rel (0) target = $region21
    $region20: #{tpu_custom_call.1} parent=1 // pred_region
      _
    $region21: #{tpu_custom_call.1} parent=1 // pred_fallthru
      _
    // Predicated region
    $region22: #{tpu_custom_call.1} parent=1 // pred_check
      _
    $region23: #{tpu_custom_call.1} parent=1 // pred_check_branch
      %1883 = sbr.rel (0) target = $region25
    $region24: #{tpu_custom_call.1} parent=1 // pred_region
      %s1885 = ssub.s32 256, 256
      %1886 = vsyncadd [#allocation3], %s1885
      %s1887 = sshll.u32 [#allocation2], 4
      %s1888 = int_to_ptr.vmem [resolvable:$true] %s1887
      %1893 = dma.vmem_to_hbm [thread:$0]  %s1888, 256, %s5, [#allocation3], 128, 128, 8
    $region25: #{tpu_custom_call.1} parent=1 // pred_fallthru
      _
    // Predicated region
    $region26: #{tpu_custom_call.1} parent=1 // pred_check
      _
    $region27: #{tpu_custom_call.1} parent=1 // pred_check_branch
      %1895 = sbr.rel (0) target = $region29
    $region28: #{tpu_custom_call.1} parent=1 // pred_region
      _
    $region29: #{tpu_custom_call.1} parent=1 // pred_fallthru
      _
    // Predicated region
    $region30: #{tpu_custom_call.1} parent=1 // pred_check
      _
    $region31: #{tpu_custom_call.1} parent=1 // pred_check_branch
      %1897 = sbr.rel (0) target = $region33
    $region32: #{tpu_custom_call.1} parent=1 // pred_region
      %1898 = dma.done [#allocation3], 256
    $region33: #{tpu_custom_call.1} parent=1 // pred_fallthru
      _
    %1899 = vsyncpa [#allocation3], 1

</llo_original>
